<compile_context>
chip_gen: v7x
topology: tpu7x:2x2x1
jax: 0.10.0
libtpu: 0.0.40
codegen_flags: <defaults>
</compile_context>

<pallas_src>
import math

import jax
import jax.numpy as jnp
from jax import lax
from jax.experimental import pallas as pl
from jax.experimental.pallas import tpu as pltpu

# ---------------- model config (small, synthetic) ----------------
B = 2          # batch
T = 8          # sequence length
D = 32         # d_model  (== EncoderLayer.size)
H = 4          # attention heads
DK = D // H    # per-head dim
DFF = 64       # feed-forward hidden size
EPS = 1e-6     # LayerNorm eps (added to std, like the PyTorch module)
BT = B * T     # folded rows


# ---------------- Pallas kernel (single invocation, no grid) ----------------
def encoder_layer_kernel(
    x_ref,      # (BT, D)        folded activations
    addm_ref,   # (BT, BT)       additive mask: 0 valid / -1e9 padded or cross-batch
    w_ref,      # (64, 224)      packed [Wqkv(96) | Wo(32) | W1(64) | W2(32)] lanes
    v_ref,      # (8, 96)        packed [bqkv | bo | b1 | b2 | ln_a0 | ln_a1 | ln_b0 | ln_b1]
    out_ref,    # (BT, D)
):
    x = x_ref[...]          # (BT, D)
    addm = addm_ref[...]    # (BT, BT)

    # ---- unpack weight slab (static ref slices, loaded once) ----
    wqkv = w_ref[0:D, 0:3 * D]                        # (D, 3D)   lanes   0: 96
    wo   = w_ref[0:D, 3 * D:4 * D]                    # (D, D)    lanes  96:128
    w1   = w_ref[0:D, 4 * D:4 * D + DFF]              # (D, DFF)  lanes 128:192
    w2   = w_ref[0:DFF, 4 * D + DFF:5 * D + DFF]      # (DFF, D)  lanes 192:224

    # ---- unpack vector slab (kept 2-D, broadcasts over rows) ----
    bqkv  = v_ref[0:1, :]            # (1, 3D)  (already carries 1/sqrt(dk) on bq)
    bo    = v_ref[1:2, 0:D]
    b1    = v_ref[2:3, 0:DFF]
    b2    = v_ref[3:4, 0:D]
    ln_a0 = v_ref[4:5, 0:D]
    ln_a1 = v_ref[5:6, 0:D]
    ln_b0 = v_ref[6:7, 0:D]
    ln_b1 = v_ref[7:8, 0:D]

    def layer_norm(v, a, b):
        # torch: a*(x-mean)/(std+eps)+b with UNBIASED std (divide by D-1)
        mean = jnp.mean(v, axis=-1, keepdims=True)
        var = jnp.sum((v - mean) ** 2, axis=-1, keepdims=True) * (1.0 / (D - 1))
        inv = pl.reciprocal(jnp.sqrt(var) + EPS, approx=True)   # EUP
        return a * (v - mean) * inv + b

    # ---- sublayer 0: x + self_attn(norm(x)) ----
    n0 = layer_norm(x, ln_a0, ln_b0)

    # Fused QKV: one (BT, D) @ (D, 3D) MXU push.  Wq/bq carry 1/sqrt(dk).
    qkv = jnp.dot(n0, wqkv, preferred_element_type=jnp.float32) + bqkv   # (BT, 3D)

    # Per-head attention directly on lane slices of qkv (no stack/relayout).
    # Static Python loop, H=4 -> fully unrolled.
    outs = []
    for h in range(H):
        qh = qkv[:, h * DK:(h + 1) * DK]               # (BT, DK)
        kh = qkv[:, D + h * DK:D + (h + 1) * DK]       # (BT, DK)
        vh = qkv[:, 2 * D + h * DK:2 * D + (h + 1) * DK]

        # scores = qh @ kh^T  (contract minor dims)  -> (BT, BT)
        s = lax.dot_general(qh, kh, (((1,), (1,)), ((), ())),
                            preferred_element_type=jnp.float32)
        s = s + addm                                    # padding + batch-block mask
        s = s - jnp.max(s, axis=-1, keepdims=True)
        p = jnp.exp(s)
        p = p * pl.reciprocal(jnp.sum(p, axis=-1, keepdims=True), approx=True)
        outs.append(jnp.dot(p, vh, preferred_element_type=jnp.float32))  # (BT, DK)

    # Lane-concat heads, single (BT, D) @ (D, D) output projection.
    o = jnp.concatenate(outs, axis=1)                   # (BT, D)
    x = x + jnp.dot(o, wo, preferred_element_type=jnp.float32) + bo

    # ---- sublayer 1: x + feed_forward(norm(x)) ----
    n1 = layer_norm(x, ln_a1, ln_b1)
    hid = jnp.maximum(
        jnp.dot(n1, w1, preferred_element_type=jnp.float32) + b1, 0.0)   # (BT, DFF)
    x = x + jnp.dot(hid, w2, preferred_element_type=jnp.float32) + b2

    out_ref[...] = x


# ---------------- host-side parameter packing (static transforms) ----------------
def pack_params(params):
    (ln_a, ln_b, wq, bq, wk, bk, wv, bv, wo, bo, w1, b1, w2, b2) = params
    inv = 1.0 / math.sqrt(DK)

    # weight slab: rows padded to max(D, DFF)=64, lanes [Wqkv | Wo | W1 | W2]
    nrows = max(D, DFF)

    def pad_rows(w):
        return jnp.pad(w, ((0, nrows - w.shape[0]), (0, 0)))

    wqkv = jnp.concatenate([wq * inv, wk, wv], axis=1)              # (D, 3D)
    wslab = jnp.concatenate(
        [pad_rows(wqkv), pad_rows(wo), pad_rows(w1), pad_rows(w2)], axis=1
    )                                                               # (64, 224)

    # vector slab: 8 rows x 3D lanes
    vw = 3 * D

    def pad_vec(v):
        return jnp.pad(v, (0, vw - v.shape[0]))[None, :]

    bqkv = jnp.concatenate([bq * inv, bk, bv])                      # (3D,)
    vecslab = jnp.concatenate(
        [bqkv[None, :], pad_vec(bo), pad_vec(b1), pad_vec(b2),
         pad_vec(ln_a[0]), pad_vec(ln_a[1]), pad_vec(ln_b[0]), pad_vec(ln_b[1])],
        axis=0,
    )                                                               # (8, 96)
    return wslab, vecslab


def build_additive_mask(mask):
    # mask: (B, 1, T) of {0,1}.  Returns (B*T, B*T) float additive mask:
    # 0 where query row and key col are in the SAME batch AND the key token
    # is not padded; -1e9 otherwise (cross-batch or padded).
    key_valid = mask[:, 0, :] > 0.5                                  # (B, T)
    same_batch = jnp.eye(B, dtype=bool)                              # (B, B)
    valid = same_batch[:, :, None] & key_valid[None, :, :]           # (B, B, T)
    valid = jnp.broadcast_to(valid[:, None, :, :], (B, T, B, T)).reshape(BT, BT)
    return jnp.where(valid, 0.0, -1e9).astype(jnp.float32)


def encoder_layer(x, mask, params):
    wslab, vecslab = pack_params(params)
    addm = build_additive_mask(mask)
    x2d = x.reshape(BT, D)

    vmem = pl.BlockSpec(memory_space=pltpu.MemorySpace.VMEM)
    out2d = pl.pallas_call(
        encoder_layer_kernel,
        out_shape=jax.ShapeDtypeStruct((BT, D), jnp.float32),
        in_specs=[vmem, vmem, vmem, vmem],
        out_specs=vmem,
    )(x2d, addm, wslab, vecslab)
    return out2d.reshape(B, T, D)


# ---------------- pure-JAX reference (EncoderLayer semantics) ----------------
def reference(x, mask, params):
    (ln_a, ln_b, wq, bq, wk, bk, wv, bv, wo, bo, w1, b1, w2, b2) = params

    def layer_norm(v, idx):
        mean = jnp.mean(v, axis=-1, keepdims=True)
        var = jnp.sum((v - mean) ** 2, axis=-1, keepdims=True) / (D - 1)
        return ln_a[idx] * (v - mean) / (jnp.sqrt(var) + EPS) + ln_b[idx]

    def mha(q_in, k_in, v_in, m):
        q = q_in @ wq + bq
        k = k_in @ wk + bk
        v = v_in @ wv + bv
        Bq, Tq = q.shape[0], q.shape[1]
        Tk = k.shape[1]
        qh = q.reshape(Bq, Tq, H, DK).transpose(0, 2, 1, 3)
        kh = k.reshape(Bq, Tk, H, DK).transpose(0, 2, 1, 3)
        vh = v.reshape(Bq, Tk, H, DK).transpose(0, 2, 1, 3)
        scores = jnp.einsum("bhqd,bhkd->bhqk", qh, kh) / math.sqrt(DK)
        scores = jnp.where(m[:, None, :, :] == 0.0, -1e9, scores)
        p = jax.nn.softmax(scores, axis=-1)
        o = jnp.einsum("bhqk,bhkd->bhqd", p, vh).transpose(0, 2, 1, 3).reshape(Bq, Tq, D)
        return o @ wo + bo

    n0 = layer_norm(x, 0)
    x = x + mha(n0, n0, n0, mask)
    n1 = layer_norm(x, 1)
    return x + (jnp.maximum(n1 @ w1 + b1, 0.0) @ w2 + b2)


if __name__ == "__main__":
    key = jax.random.PRNGKey(0)
    ks = jax.random.split(key, 14)

    x = jax.random.normal(ks[0], (B, T, D), jnp.float32)

    # encoder padding mask [B, 1, T]; batch 1 masks its last 2 tokens
    mask = jnp.ones((B, 1, T), jnp.float32)
    mask = mask.at[1, 0, T - 2:].set(0.0)

    scale = 0.05
    params = (
        jnp.ones((2, D), jnp.float32),                               # ln_a
        jnp.zeros((2, D), jnp.float32),                              # ln_b
        scale * jax.random.normal(ks[1], (D, D), jnp.float32),       # Wq
        scale * jax.random.normal(ks[2], (D,), jnp.float32),         # bq
        scale * jax.random.normal(ks[3], (D, D), jnp.float32),       # Wk
        scale * jax.random.normal(ks[4], (D,), jnp.float32),         # bk
        scale * jax.random.normal(ks[5], (D, D), jnp.float32),       # Wv
        scale * jax.random.normal(ks[6], (D,), jnp.float32),         # bv
        scale * jax.random.normal(ks[7], (D, D), jnp.float32),       # Wo
        scale * jax.random.normal(ks[8], (D,), jnp.float32),         # bo
        scale * jax.random.normal(ks[9], (D, DFF), jnp.float32),     # FFN W1
        scale * jax.random.normal(ks[10], (DFF,), jnp.float32),      # FFN b1
        scale * jax.random.normal(ks[11], (DFF, D), jnp.float32),    # FFN W2
        scale * jax.random.normal(ks[12], (D,), jnp.float32),        # FFN b2
    )

    out = encoder_layer(x, mask, params)
    out = jax.block_until_ready(out)

    ref = reference(x, mask, params)
    assert out.shape == (B, T, D)
    # tolerance absorbs the intentional approx (EUP) reciprocals in softmax + LayerNorm
    assert jnp.allclose(out, ref, atol=2e-3, rtol=2e-3), "mismatch vs. JAX reference"

    print("KERNEL_OK")
</pallas_src>

<mosaic_0001>
module attributes {stable_mosaic.version = 11 : i64} {
  func.func @encoder_layer_kernel(%arg0: memref<16x32xf32, #tpu.memory_space<vmem>>, %arg1: memref<16x16xf32, #tpu.memory_space<vmem>>, %arg2: memref<64x224xf32, #tpu.memory_space<vmem>>, %arg3: memref<8x96xf32, #tpu.memory_space<vmem>>, %arg4: memref<16x32xf32, #tpu.memory_space<vmem>>) attributes {dimension_semantics = [], scalar_prefetch = 0 : i64, scratch_operands = 0 : i64, tpu.core_type = #tpu.core_type<tc>} {
    %c0 = arith.constant 0 : index
    %c0_0 = arith.constant 0 : index
    %0 = vector.load %arg0[%c0, %c0_0] : memref<16x32xf32, #tpu.memory_space<vmem>>, vector<16x32xf32>
    %c0_1 = arith.constant 0 : index
    %c0_2 = arith.constant 0 : index
    %1 = vector.load %arg1[%c0_1, %c0_2] : memref<16x16xf32, #tpu.memory_space<vmem>>, vector<16x16xf32>
    %c0_3 = arith.constant 0 : index
    %c0_4 = arith.constant 0 : index
    %2 = vector.load %arg2[%c0_3, %c0_4] : memref<64x224xf32, #tpu.memory_space<vmem>>, vector<32x96xf32>
    %c0_5 = arith.constant 0 : index
    %c96 = arith.constant 96 : index
    %3 = vector.load %arg2[%c0_5, %c96] : memref<64x224xf32, #tpu.memory_space<vmem>>, vector<32x32xf32>
    %c0_6 = arith.constant 0 : index
    %c128 = arith.constant 128 : index
    %4 = vector.load %arg2[%c0_6, %c128] : memref<64x224xf32, #tpu.memory_space<vmem>>, vector<32x64xf32>
    %c0_7 = arith.constant 0 : index
    %c192 = arith.constant 192 : index
    %5 = vector.load %arg2[%c0_7, %c192] : memref<64x224xf32, #tpu.memory_space<vmem>>, vector<64x32xf32>
    %c0_8 = arith.constant 0 : index
    %c0_9 = arith.constant 0 : index
    %6 = vector.load %arg3[%c0_8, %c0_9] : memref<8x96xf32, #tpu.memory_space<vmem>>, vector<1x96xf32>
    %c1 = arith.constant 1 : index
    %c0_10 = arith.constant 0 : index
    %7 = vector.load %arg3[%c1, %c0_10] : memref<8x96xf32, #tpu.memory_space<vmem>>, vector<1x32xf32>
    %c2 = arith.constant 2 : index
    %c0_11 = arith.constant 0 : index
    %8 = vector.load %arg3[%c2, %c0_11] : memref<8x96xf32, #tpu.memory_space<vmem>>, vector<1x64xf32>
    %c3 = arith.constant 3 : index
    %c0_12 = arith.constant 0 : index
    %9 = vector.load %arg3[%c3, %c0_12] : memref<8x96xf32, #tpu.memory_space<vmem>>, vector<1x32xf32>
    %c4 = arith.constant 4 : index
    %c0_13 = arith.constant 0 : index
    %10 = vector.load %arg3[%c4, %c0_13] : memref<8x96xf32, #tpu.memory_space<vmem>>, vector<1x32xf32>
    %c5 = arith.constant 5 : index
    %c0_14 = arith.constant 0 : index
    %11 = vector.load %arg3[%c5, %c0_14] : memref<8x96xf32, #tpu.memory_space<vmem>>, vector<1x32xf32>
    %c6 = arith.constant 6 : index
    %c0_15 = arith.constant 0 : index
    %12 = vector.load %arg3[%c6, %c0_15] : memref<8x96xf32, #tpu.memory_space<vmem>>, vector<1x32xf32>
    %c7 = arith.constant 7 : index
    %c0_16 = arith.constant 0 : index
    %13 = vector.load %arg3[%c7, %c0_16] : memref<8x96xf32, #tpu.memory_space<vmem>>, vector<1x32xf32>
    %cst = arith.constant dense<0.000000e+00> : vector<16xf32>
    %14 = vector.multi_reduction <add>, %0, %cst [1] : vector<16x32xf32> to vector<16xf32>
    %15 = vector.shape_cast %14 : vector<16xf32> to vector<16x1xf32>
    %cst_17 = arith.constant 3.200000e+01 : f32
    %16 = vector.broadcast %cst_17 : f32 to vector<16x1xf32>
    %17 = arith.divf %15, %16 : vector<16x1xf32>
    %18 = vector.broadcast %17 : vector<16x1xf32> to vector<16x32xf32>
    %19 = arith.subf %0, %18 : vector<16x32xf32>
    %20 = arith.mulf %19, %19 : vector<16x32xf32>
    %cst_18 = arith.constant dense<0.000000e+00> : vector<16xf32>
    %21 = vector.multi_reduction <add>, %20, %cst_18 [1] : vector<16x32xf32> to vector<16xf32>
    %22 = vector.shape_cast %21 : vector<16xf32> to vector<16x1xf32>
    %cst_19 = arith.constant 0.0322580636 : f32
    %23 = vector.broadcast %cst_19 : f32 to vector<16x1xf32>
    %24 = arith.mulf %22, %23 : vector<16x1xf32>
    %25 = math.sqrt %24 : vector<16x1xf32>
    %cst_20 = arith.constant 9.99999997E-7 : f32
    %26 = vector.broadcast %cst_20 : f32 to vector<16x1xf32>
    %27 = arith.addf %25, %26 : vector<16x1xf32>
    %28 = tpu.reciprocal %27 {approx = true} : vector<16x1xf32> -> vector<16x1xf32>
    %29 = vector.broadcast %17 : vector<16x1xf32> to vector<16x32xf32>
    %30 = arith.subf %0, %29 : vector<16x32xf32>
    %31 = vector.broadcast %10 : vector<1x32xf32> to vector<16x32xf32>
    %32 = arith.mulf %31, %30 : vector<16x32xf32>
    %33 = vector.broadcast %28 : vector<16x1xf32> to vector<16x32xf32>
    %34 = arith.mulf %32, %33 : vector<16x32xf32>
    %35 = vector.broadcast %12 : vector<1x32xf32> to vector<16x32xf32>
    %36 = arith.addf %34, %35 : vector<16x32xf32>
    %cst_21 = arith.constant dense<0.000000e+00> : vector<16x96xf32>
    %37 = tpu.matmul %36, %2, %cst_21 {dimension_numbers = #tpu.dot_dimension_numbers<[1], [0], [0], [1], [0, 0, 1, 1], [], []>} : vector<16x32xf32>, vector<32x96xf32>, vector<16x96xf32> -> vector<16x96xf32>
    %38 = vector.broadcast %6 : vector<1x96xf32> to vector<16x96xf32>
    %39 = arith.addf %37, %38 : vector<16x96xf32>
    %40 = vector.extract_strided_slice %39 {offsets = [0, 0], sizes = [16, 8], strides = [1, 1]} : vector<16x96xf32> to vector<16x8xf32>
    %41 = vector.extract_strided_slice %39 {offsets = [0, 32], sizes = [16, 8], strides = [1, 1]} : vector<16x96xf32> to vector<16x8xf32>
    %42 = vector.extract_strided_slice %39 {offsets = [0, 64], sizes = [16, 8], strides = [1, 1]} : vector<16x96xf32> to vector<16x8xf32>
    %cst_22 = arith.constant dense<0.000000e+00> : vector<16x16xf32>
    %43 = tpu.matmul %40, %41, %cst_22 {dimension_numbers = #tpu.dot_dimension_numbers<[1], [1], [0], [0], [0, 0, 1, 0], [], []>} : vector<16x8xf32>, vector<16x8xf32>, vector<16x16xf32> -> vector<16x16xf32>
    %44 = arith.addf %43, %1 : vector<16x16xf32>
    %cst_23 = arith.constant dense<0xFF800000> : vector<16xf32>
    %45 = vector.multi_reduction <maximumf>, %44, %cst_23 [1] : vector<16x16xf32> to vector<16xf32>
    %46 = vector.shape_cast %45 : vector<16xf32> to vector<16x1xf32>
    %47 = vector.broadcast %46 : vector<16x1xf32> to vector<16x16xf32>
    %48 = arith.subf %44, %47 : vector<16x16xf32>
    %49 = math.exp %48 : vector<16x16xf32>
    %cst_24 = arith.constant dense<0.000000e+00> : vector<16xf32>
    %50 = vector.multi_reduction <add>, %49, %cst_24 [1] : vector<16x16xf32> to vector<16xf32>
    %51 = vector.shape_cast %50 : vector<16xf32> to vector<16x1xf32>
    %52 = tpu.reciprocal %51 {approx = true} : vector<16x1xf32> -> vector<16x1xf32>
    %53 = vector.broadcast %52 : vector<16x1xf32> to vector<16x16xf32>
    %54 = arith.mulf %49, %53 : vector<16x16xf32>
    %cst_25 = arith.constant dense<0.000000e+00> : vector<16x8xf32>
    %55 = tpu.matmul %54, %42, %cst_25 {dimension_numbers = #tpu.dot_dimension_numbers<[1], [0], [0], [1], [0, 0, 1, 1], [], []>} : vector<16x16xf32>, vector<16x8xf32>, vector<16x8xf32> -> vector<16x8xf32>
    %56 = vector.extract_strided_slice %39 {offsets = [0, 8], sizes = [16, 8], strides = [1, 1]} : vector<16x96xf32> to vector<16x8xf32>
    %57 = vector.extract_strided_slice %39 {offsets = [0, 40], sizes = [16, 8], strides = [1, 1]} : vector<16x96xf32> to vector<16x8xf32>
    %58 = vector.extract_strided_slice %39 {offsets = [0, 72], sizes = [16, 8], strides = [1, 1]} : vector<16x96xf32> to vector<16x8xf32>
    %cst_26 = arith.constant dense<0.000000e+00> : vector<16x16xf32>
    %59 = tpu.matmul %56, %57, %cst_26 {dimension_numbers = #tpu.dot_dimension_numbers<[1], [1], [0], [0], [0, 0, 1, 0], [], []>} : vector<16x8xf32>, vector<16x8xf32>, vector<16x16xf32> -> vector<16x16xf32>
    %60 = arith.addf %59, %1 : vector<16x16xf32>
    %cst_27 = arith.constant dense<0xFF800000> : vector<16xf32>
    %61 = vector.multi_reduction <maximumf>, %60, %cst_27 [1] : vector<16x16xf32> to vector<16xf32>
    %62 = vector.shape_cast %61 : vector<16xf32> to vector<16x1xf32>
    %63 = vector.broadcast %62 : vector<16x1xf32> to vector<16x16xf32>
    %64 = arith.subf %60, %63 : vector<16x16xf32>
    %65 = math.exp %64 : vector<16x16xf32>
    %cst_28 = arith.constant dense<0.000000e+00> : vector<16xf32>
    %66 = vector.multi_reduction <add>, %65, %cst_28 [1] : vector<16x16xf32> to vector<16xf32>
    %67 = vector.shape_cast %66 : vector<16xf32> to vector<16x1xf32>
    %68 = tpu.reciprocal %67 {approx = true} : vector<16x1xf32> -> vector<16x1xf32>
    %69 = vector.broadcast %68 : vector<16x1xf32> to vector<16x16xf32>
    %70 = arith.mulf %65, %69 : vector<16x16xf32>
    %cst_29 = arith.constant dense<0.000000e+00> : vector<16x8xf32>
    %71 = tpu.matmul %70, %58, %cst_29 {dimension_numbers = #tpu.dot_dimension_numbers<[1], [0], [0], [1], [0, 0, 1, 1], [], []>} : vector<16x16xf32>, vector<16x8xf32>, vector<16x8xf32> -> vector<16x8xf32>
    %72 = vector.extract_strided_slice %39 {offsets = [0, 16], sizes = [16, 8], strides = [1, 1]} : vector<16x96xf32> to vector<16x8xf32>
    %73 = vector.extract_strided_slice %39 {offsets = [0, 48], sizes = [16, 8], strides = [1, 1]} : vector<16x96xf32> to vector<16x8xf32>
    %74 = vector.extract_strided_slice %39 {offsets = [0, 80], sizes = [16, 8], strides = [1, 1]} : vector<16x96xf32> to vector<16x8xf32>
    %cst_30 = arith.constant dense<0.000000e+00> : vector<16x16xf32>
    %75 = tpu.matmul %72, %73, %cst_30 {dimension_numbers = #tpu.dot_dimension_numbers<[1], [1], [0], [0], [0, 0, 1, 0], [], []>} : vector<16x8xf32>, vector<16x8xf32>, vector<16x16xf32> -> vector<16x16xf32>
    %76 = arith.addf %75, %1 : vector<16x16xf32>
    %cst_31 = arith.constant dense<0xFF800000> : vector<16xf32>
    %77 = vector.multi_reduction <maximumf>, %76, %cst_31 [1] : vector<16x16xf32> to vector<16xf32>
    %78 = vector.shape_cast %77 : vector<16xf32> to vector<16x1xf32>
    %79 = vector.broadcast %78 : vector<16x1xf32> to vector<16x16xf32>
    %80 = arith.subf %76, %79 : vector<16x16xf32>
    %81 = math.exp %80 : vector<16x16xf32>
    %cst_32 = arith.constant dense<0.000000e+00> : vector<16xf32>
    %82 = vector.multi_reduction <add>, %81, %cst_32 [1] : vector<16x16xf32> to vector<16xf32>
    %83 = vector.shape_cast %82 : vector<16xf32> to vector<16x1xf32>
    %84 = tpu.reciprocal %83 {approx = true} : vector<16x1xf32> -> vector<16x1xf32>
    %85 = vector.broadcast %84 : vector<16x1xf32> to vector<16x16xf32>
    %86 = arith.mulf %81, %85 : vector<16x16xf32>
    %cst_33 = arith.constant dense<0.000000e+00> : vector<16x8xf32>
    %87 = tpu.matmul %86, %74, %cst_33 {dimension_numbers = #tpu.dot_dimension_numbers<[1], [0], [0], [1], [0, 0, 1, 1], [], []>} : vector<16x16xf32>, vector<16x8xf32>, vector<16x8xf32> -> vector<16x8xf32>
    %88 = vector.extract_strided_slice %39 {offsets = [0, 24], sizes = [16, 8], strides = [1, 1]} : vector<16x96xf32> to vector<16x8xf32>
    %89 = vector.extract_strided_slice %39 {offsets = [0, 56], sizes = [16, 8], strides = [1, 1]} : vector<16x96xf32> to vector<16x8xf32>
    %90 = vector.extract_strided_slice %39 {offsets = [0, 88], sizes = [16, 8], strides = [1, 1]} : vector<16x96xf32> to vector<16x8xf32>
    %cst_34 = arith.constant dense<0.000000e+00> : vector<16x16xf32>
    %91 = tpu.matmul %88, %89, %cst_34 {dimension_numbers = #tpu.dot_dimension_numbers<[1], [1], [0], [0], [0, 0, 1, 0], [], []>} : vector<16x8xf32>, vector<16x8xf32>, vector<16x16xf32> -> vector<16x16xf32>
    %92 = arith.addf %91, %1 : vector<16x16xf32>
    %cst_35 = arith.constant dense<0xFF800000> : vector<16xf32>
    %93 = vector.multi_reduction <maximumf>, %92, %cst_35 [1] : vector<16x16xf32> to vector<16xf32>
    %94 = vector.shape_cast %93 : vector<16xf32> to vector<16x1xf32>
    %95 = vector.broadcast %94 : vector<16x1xf32> to vector<16x16xf32>
    %96 = arith.subf %92, %95 : vector<16x16xf32>
    %97 = math.exp %96 : vector<16x16xf32>
    %cst_36 = arith.constant dense<0.000000e+00> : vector<16xf32>
    %98 = vector.multi_reduction <add>, %97, %cst_36 [1] : vector<16x16xf32> to vector<16xf32>
    %99 = vector.shape_cast %98 : vector<16xf32> to vector<16x1xf32>
    %100 = tpu.reciprocal %99 {approx = true} : vector<16x1xf32> -> vector<16x1xf32>
    %101 = vector.broadcast %100 : vector<16x1xf32> to vector<16x16xf32>
    %102 = arith.mulf %97, %101 : vector<16x16xf32>
    %cst_37 = arith.constant dense<0.000000e+00> : vector<16x8xf32>
    %103 = tpu.matmul %102, %90, %cst_37 {dimension_numbers = #tpu.dot_dimension_numbers<[1], [0], [0], [1], [0, 0, 1, 1], [], []>} : vector<16x16xf32>, vector<16x8xf32>, vector<16x8xf32> -> vector<16x8xf32>
    %104 = tpu.concatenate %55, %71, %87, %103 in 1 : vector<16x8xf32>, vector<16x8xf32>, vector<16x8xf32>, vector<16x8xf32> -> vector<16x32xf32>
    %cst_38 = arith.constant dense<0.000000e+00> : vector<16x32xf32>
    %105 = tpu.matmul %104, %3, %cst_38 {dimension_numbers = #tpu.dot_dimension_numbers<[1], [0], [0], [1], [0, 0, 1, 1], [], []>} : vector<16x32xf32>, vector<32x32xf32>, vector<16x32xf32> -> vector<16x32xf32>
    %106 = arith.addf %0, %105 : vector<16x32xf32>
    %107 = vector.broadcast %7 : vector<1x32xf32> to vector<16x32xf32>
    %108 = arith.addf %106, %107 : vector<16x32xf32>
    %cst_39 = arith.constant dense<0.000000e+00> : vector<16xf32>
    %109 = vector.multi_reduction <add>, %108, %cst_39 [1] : vector<16x32xf32> to vector<16xf32>
    %110 = vector.shape_cast %109 : vector<16xf32> to vector<16x1xf32>
    %cst_40 = arith.constant 3.200000e+01 : f32
    %111 = vector.broadcast %cst_40 : f32 to vector<16x1xf32>
    %112 = arith.divf %110, %111 : vector<16x1xf32>
    %113 = vector.broadcast %112 : vector<16x1xf32> to vector<16x32xf32>
    %114 = arith.subf %108, %113 : vector<16x32xf32>
    %115 = arith.mulf %114, %114 : vector<16x32xf32>
    %cst_41 = arith.constant dense<0.000000e+00> : vector<16xf32>
    %116 = vector.multi_reduction <add>, %115, %cst_41 [1] : vector<16x32xf32> to vector<16xf32>
    %117 = vector.shape_cast %116 : vector<16xf32> to vector<16x1xf32>
    %cst_42 = arith.constant 0.0322580636 : f32
    %118 = vector.broadcast %cst_42 : f32 to vector<16x1xf32>
    %119 = arith.mulf %117, %118 : vector<16x1xf32>
    %120 = math.sqrt %119 : vector<16x1xf32>
    %cst_43 = arith.constant 9.99999997E-7 : f32
    %121 = vector.broadcast %cst_43 : f32 to vector<16x1xf32>
    %122 = arith.addf %120, %121 : vector<16x1xf32>
    %123 = tpu.reciprocal %122 {approx = true} : vector<16x1xf32> -> vector<16x1xf32>
    %124 = vector.broadcast %112 : vector<16x1xf32> to vector<16x32xf32>
    %125 = arith.subf %108, %124 : vector<16x32xf32>
    %126 = vector.broadcast %11 : vector<1x32xf32> to vector<16x32xf32>
    %127 = arith.mulf %126, %125 : vector<16x32xf32>
    %128 = vector.broadcast %123 : vector<16x1xf32> to vector<16x32xf32>
    %129 = arith.mulf %127, %128 : vector<16x32xf32>
    %130 = vector.broadcast %13 : vector<1x32xf32> to vector<16x32xf32>
    %131 = arith.addf %129, %130 : vector<16x32xf32>
    %cst_44 = arith.constant dense<0.000000e+00> : vector<16x64xf32>
    %132 = tpu.matmul %131, %4, %cst_44 {dimension_numbers = #tpu.dot_dimension_numbers<[1], [0], [0], [1], [0, 0, 1, 1], [], []>} : vector<16x32xf32>, vector<32x64xf32>, vector<16x64xf32> -> vector<16x64xf32>
    %133 = vector.broadcast %8 : vector<1x64xf32> to vector<16x64xf32>
    %134 = arith.addf %132, %133 : vector<16x64xf32>
    %cst_45 = arith.constant 0.000000e+00 : f32
    %135 = vector.broadcast %cst_45 : f32 to vector<16x64xf32>
    %136 = arith.maximumf %134, %135 : vector<16x64xf32>
    %cst_46 = arith.constant dense<0.000000e+00> : vector<16x32xf32>
    %137 = tpu.matmul %136, %5, %cst_46 {dimension_numbers = #tpu.dot_dimension_numbers<[1], [0], [0], [1], [0, 0, 1, 1], [], []>} : vector<16x64xf32>, vector<64x32xf32>, vector<16x32xf32> -> vector<16x32xf32>
    %138 = arith.addf %108, %137 : vector<16x32xf32>
    %139 = vector.broadcast %9 : vector<1x32xf32> to vector<16x32xf32>
    %140 = arith.addf %138, %139 : vector<16x32xf32>
    %c0_47 = arith.constant 0 : index
    %c0_48 = arith.constant 0 : index
    %141 = vector.load %arg4[%c0_47, %c0_48] : memref<16x32xf32, #tpu.memory_space<vmem>>, vector<16x32xf32>
    tpu.vector_store %arg4[%c0_47, %c0_48], %140 {strides = array<i32>} : memref<16x32xf32, #tpu.memory_space<vmem>>, vector<16x32xf32>,
    return
  }
}

</mosaic_0001>

<llo_original>
// kernel: tpu_custom_call.1
$region0: #{tpu_custom_call.1}
  #allocation0 [shape = 'u32[]', space=smem, size = 0x4, offset = 0x4, fixed_abs, tag = 'smem constant byte address 0x4 - core index']
  #allocation1 [shape = 'u32[144,128]{1,0:T(1,128)}', space=vmem, size = 0x12000, scoped, tag = 'internal scratch']
  %s0 = inlined_call_operand.hbm [shape: f32[16,32], index: 0, kind: input, shape index: {}]
  %s1 = inlined_call_operand.hbm [shape: f32[16,16], index: 1, kind: input, shape index: {}]
  %s2 = inlined_call_operand.hbm [shape: f32[64,224], index: 2, kind: input, shape index: {}]
  %s3 = inlined_call_operand.vmem [shape: f32[8,96], index: 3, kind: input, shape index: {}]
  %s4 = inlined_call_operand.hbm [shape: f32[16,32], index: 4, kind: output, shape index: {}]
  %s5 = sld [smem:[#allocation0]]
  $region38: #{tpu_custom_call.1} parent=0
    _
  %s7 = ssub.s32 1, %s5
  %s8 = scalar_select 0, %s7, %s5
  $region1: #{tpu_custom_call.1} parent=0
    #allocation2 [shape = 'u8[8192]{0}', space=vmem, size = 0x2000, scoped, tag = 'input window, operand 0, single buffered']
    #allocation3 [shape = 's32[1]{0}', space=sflag, size = 0x4, scoped, tag = 'scoped memory for tpu_custom_call.1']
    #allocation4 [shape = 's32[1]{0}', space=sflag, size = 0x4, scoped, tag = 'scoped memory for tpu_custom_call.1']
    #allocation5 [shape = 'u8[8192]{0}', space=vmem, size = 0x2000, scoped, tag = 'input window, operand 1, single buffered']
    #allocation6 [shape = 's32[1]{0}', space=sflag, size = 0x4, scoped, tag = 'scoped memory for tpu_custom_call.1']
    #allocation7 [shape = 'u8[65536]{0}', space=vmem, size = 0x10000, scoped, tag = 'input window, operand 2, single buffered']
    #allocation8 [shape = 'u8[8192]{0}', space=vmem, size = 0x2000, scoped, tag = 'output window, operand 0, single buffered']
    %9 = vsyncpa [#allocation3], 0
    %10 = vsyncpa [#allocation6], 0
    %11 = vsyncpa [#allocation4], 0
    // Predicated region
    $region2: #{tpu_custom_call.1} parent=1 // pred_check
      _
    $region3: #{tpu_custom_call.1} parent=1 // pred_check_branch
      %13 = sbr.rel (0) target = $region5
    $region4: #{tpu_custom_call.1} parent=1 // pred_region
      %s15 = ssub.s32 256, 256
      %16 = vsyncadd [#allocation3], %s15
      %s17 = sshll.u32 [#allocation2], 4
      %s18 = int_to_ptr.vmem [resolvable:$true] %s17
      %23 = dma.hbm_to_vmem [thread:$0]  %s0, 256, %s18, [#allocation3], 128, 128, 8
    $region5: #{tpu_custom_call.1} parent=1 // pred_fallthru
      _
    // Predicated region
    $region6: #{tpu_custom_call.1} parent=1 // pred_check
      _
    $region7: #{tpu_custom_call.1} parent=1 // pred_check_branch
      %25 = sbr.rel (0) target = $region9
    $region8: #{tpu_custom_call.1} parent=1 // pred_region
      %s27 = ssub.s32 256, 256
      %28 = vsyncadd [#allocation6], %s27
      %s29 = sshll.u32 [#allocation5], 4
      %s30 = int_to_ptr.vmem [resolvable:$true] %s29
      %35 = dma.hbm_to_vmem [thread:$0]  %s1, 256, %s30, [#allocation6], 128, 128, 8
    $region9: #{tpu_custom_call.1} parent=1 // pred_fallthru
      _
    // Predicated region
    $region10: #{tpu_custom_call.1} parent=1 // pred_check
      _
    $region11: #{tpu_custom_call.1} parent=1 // pred_check_branch
      %37 = sbr.rel (0) target = $region13
    $region12: #{tpu_custom_call.1} parent=1 // pred_region
      %s39 = ssub.s32 2048, 2048
      %40 = vsyncadd [#allocation6], %s39
      %s41 = sshll.u32 [#allocation7], 4
      %s42 = int_to_ptr.vmem [resolvable:$true] %s41
      %47 = dma.hbm_to_vmem [thread:$0]  %s2, 2048, %s42, [#allocation6], 256, 256, 16
    $region13: #{tpu_custom_call.1} parent=1 // pred_fallthru
      _
    // Predicated region
    $region14: #{tpu_custom_call.1} parent=1 // pred_check
      _
    $region15: #{tpu_custom_call.1} parent=1 // pred_check_branch
      %49 = sbr.rel (0) target = $region17
    $region16: #{tpu_custom_call.1} parent=1 // pred_region
      _
    $region17: #{tpu_custom_call.1} parent=1 // pred_fallthru
      _
    // Predicated region
    $region18: #{tpu_custom_call.1} parent=1 // pred_check
      _
    $region19: #{tpu_custom_call.1} parent=1 // pred_check_branch
      %51 = sbr.rel (0) target = $region21
    $region20: #{tpu_custom_call.1} parent=1 // pred_region
      %52 = dma.done [#allocation3], 256
    $region21: #{tpu_custom_call.1} parent=1 // pred_fallthru
      _
    // Predicated region
    $region22: #{tpu_custom_call.1} parent=1 // pred_check
      _
    $region23: #{tpu_custom_call.1} parent=1 // pred_check_branch
      %54 = sbr.rel (0) target = $region25
    $region24: #{tpu_custom_call.1} parent=1 // pred_region
      %55 = dma.done [#allocation6], 256
    $region25: #{tpu_custom_call.1} parent=1 // pred_fallthru
      _
    // Predicated region
    $region26: #{tpu_custom_call.1} parent=1 // pred_check
      _
    $region27: #{tpu_custom_call.1} parent=1 // pred_check_branch
      %57 = sbr.rel (0) target = $region29
    $region28: #{tpu_custom_call.1} parent=1 // pred_region
      %58 = dma.done [#allocation6], 2048
    $region29: #{tpu_custom_call.1} parent=1 // pred_fallthru
      _
    %v59 = vld [vmem:[#allocation2] sm:$0xff]
    %v60 = vld [vmem:[#allocation2 + $0x8] sm:$0xff]
    %v61 = vld [vmem:[#allocation5] sm:$0xff]
    %v62 = vld [vmem:[#allocation5 + $0x8] sm:$0xff]
    %v63 = vld [vmem:[#allocation7] sm:$0xff]
    %v64 = vld [vmem:[#allocation7 + $0x10] sm:$0xff]
    %v65 = vld [vmem:[#allocation7 + $0x20] sm:$0xff]
    %v66 = vld [vmem:[#allocation7 + $0x30] sm:$0xff]
    %v67 = vld [vmem:[#allocation7 + $0x8] sm:$0xff]
    %v68 = vld [vmem:[#allocation7 + $0x18] sm:$0xff]
    %v69 = vld [vmem:[#allocation7 + $0x28] sm:$0xff]
    %v70 = vld [vmem:[#allocation7 + $0x38] sm:$0xff]
    %v71 = vld [vmem:[#allocation7 + $0x48] sm:$0xff]
    %v72 = vld [vmem:[#allocation7 + $0x58] sm:$0xff]
    %v73 = vld [vmem:[#allocation7 + $0x68] sm:$0xff]
    %v74 = vld [vmem:[#allocation7 + $0x78] sm:$0xff]
    %v75 = vld [vmem:[%s3] sm:$0x1]
    %v76 = vld [vmem:[%s3 + $0x1] sm:$0x1]
    %v77 = vld [vmem:[%s3 + $0x2] sm:$0x1]
    %v78 = vld [vmem:[%s3 + $0x3] sm:$0x1]
    %v79 = vld [vmem:[%s3 + $0x4] sm:$0x1]
    %v80 = vld [vmem:[%s3 + $0x5] sm:$0x1]
    %v81 = vld [vmem:[%s3 + $0x6] sm:$0x1]
    %v82 = vld [vmem:[%s3 + $0x7] sm:$0x1]
    %vm83 = vcmask 261120
    %v84 = vsel %vm83, %v59, 0.0
    %85 = vadd.xlane.f32.xlu0 %v84
    %v86 = vpop.xlane.xlu0 %85
    %v87 = vsel %vm83, %v60, 0.0
    %88 = vadd.xlane.f32.xlu0 %v87
    %v89 = vpop.xlane.xlu0 %88
    %v90 = vrcp.pop 32.0
    %v91 = vmul.f32 %v86, %v90
    %v92 = vmul.f32 %v89, %v90
    %v93 = vsub.f32 %v59, %v91
    %v94 = vsub.f32 %v60, %v92
    %v95 = vmul.f32 %v93, %v93
    %v96 = vmul.f32 %v94, %v94
    %v97 = vsel %vm83, %v95, 0.0
    %98 = vadd.xlane.f32.xlu0 %v97
    %v99 = vpop.xlane.xlu0 %98
    %v100 = vsel %vm83, %v96, 0.0
    %101 = vadd.xlane.f32.xlu0 %v100
    %v102 = vpop.xlane.xlu0 %101
    %v103 = vmul.f32 %v99, 0.032258064
    %v104 = vmul.f32 %v102, 0.032258064
    %v105 = vrsqrt.pop %v103
    %v106 = vmul.f32 %v103, %v105
    %vm107 = vcmp.eq.f32.partialorder %v103, inf
    %v108 = vsel %vm107, %v103, %v106
    %vm109 = vcmp.eq.f32.partialorder %v103, 0.0
    %v110 = vand.u32 %v103, 2147483648
    %v111 = vsel %vm109, %v110, %v108
    %v112 = vrsqrt.pop %v104
    %v113 = vmul.f32 %v104, %v112
    %vm114 = vcmp.eq.f32.partialorder %v104, inf
    %v115 = vsel %vm114, %v104, %v113
    %vm116 = vcmp.eq.f32.partialorder %v104, 0.0
    %v117 = vand.u32 %v104, 2147483648
    %v118 = vsel %vm116, %v117, %v115
    %v119 = vadd.f32 %v111, 1e-06
    %v120 = vadd.f32 %v118, 1e-06
    %v121 = vrcp.pop %v119
    %v122 = vrcp.pop %v120
    %v123 = vlaneseq
    %v124 = vshrl.u32 %v123, 7
    %v125 = vsub.s32 0, %v124
    %v126 = vrot.slane %v79, %v125
    %v127 = vmul.f32 %v126, %v93
    %v128 = vmul.f32 %v126, %v94
    %v129 = vmul.f32 %v127, %v121
    %v130 = vmul.f32 %v128, %v122
    %v131 = vlaneseq
    %v132 = vshrl.u32 %v131, 7
    %v133 = vsub.s32 0, %v132
    %v134 = vrot.slane %v81, %v133
    %v135 = vadd.f32 %v129, %v134
    %v136 = vadd.f32 %v130, %v134
    %v137 = vlaneseq
    %v138 = vshrl.u32 %v137, 7
    %v139 = vsub.s32 0, %v138
    %v140 = vrot.slane %v75, %v139
    %v142 = vsel %vm83, %v135, 0
    %v145 = vsel %vm83, %v136, 0
    %147 = vmatprep.subr.mxu0 0.0
    %148 = vmatpush1.msra.mxu0 %v63
    %149 = vmatprep.subr.mxu0 0.0
    %150 = vmatpush1.msra.mxu0 %v64
    %151 = vmatprep.subr.mxu0 0.0
    %152 = vmatpush1.msra.mxu0 %v65
    %153 = vmatprep.subr.mxu0 0.0
    %154 = vmatpush1.msra.mxu0 %v66
    %155 = vmatprep.subr.mxu0 0.0
    %156 = vmatpush1.msra.mxu0 0.0
    %157 = vmatprep.subr.mxu0 0.0
    %158 = vmatpush1.msra.mxu0 0.0
    %159 = vmatprep.subr.mxu0 0.0
    %160 = vmatpush1.msra.mxu0 0.0
    %161 = vmatprep.subr.mxu0 0.0
    %162 = vmatpush1.msra.mxu0 0.0
    %163 = vmatprep.subr.mxu0 0.0
    %164 = vmatpush1.msra.mxu0 0.0
    %165 = vmatprep.subr.mxu0 0.0
    %166 = vmatpush1.msra.mxu0 0.0
    %167 = vmatprep.subr.mxu0 0.0
    %168 = vmatpush1.msra.mxu0 0.0
    %169 = vmatprep.subr.mxu0 0.0
    %170 = vmatpush1.msra.mxu0 0.0
    %171 = vmatprep.subr.mxu0 0.0
    %172 = vmatpush1.msra.mxu0 0.0
    %173 = vmatprep.subr.mxu0 0.0
    %174 = vmatpush1.msra.mxu0 0.0
    %175 = vmatprep.subr.mxu0 0.0
    %176 = vmatpush1.msra.mxu0 0.0
    %177 = vmatprep.subr.mxu0 0.0
    %178 = vmatpush1.msra.mxu0 0.0
    %179 = vmatprep.subr.mxu0 0.0
    %180 = vmatpush1.msra.mxu0 0.0
    %181 = vmatprep.subr.mxu0 0.0
    %182 = vmatpush1.msra.mxu0 0.0
    %183 = vmatprep.subr.mxu0 0.0
    %184 = vmatpush1.msra.mxu0 0.0
    %185 = vmatprep.subr.mxu0 0.0
    %186 = vmatpush1.msra.mxu0 0.0
    %187 = vmatprep.subr.mxu0 0.0
    %188 = vmatpush1.msra.mxu0 0.0
    %189 = vmatprep.subr.mxu0 0.0
    %190 = vmatpush1.msra.mxu0 0.0
    %191 = vmatprep.subr.mxu0 0.0
    %192 = vmatpush1.msra.mxu0 0.0
    %193 = vmatprep.subr.mxu0 0.0
    %194 = vmatpush1.msra.mxu0 0.0
    %195 = vmatprep.subr.mxu0 0.0
    %196 = vmatpush1.msra.mxu0 0.0
    %197 = vmatprep.subr.mxu0 0.0
    %198 = vmatpush1.msra.mxu0 0.0
    %199 = vmatprep.subr.mxu0 0.0
    %200 = vmatpush1.msra.mxu0 0.0
    %201 = vmatprep.subr.mxu0 0.0
    %202 = vmatpush1.msra.mxu0 0.0
    %203 = vmatprep.subr.mxu0 0.0
    %204 = vmatpush1.msra.mxu0 0.0
    %205 = vmatprep.subr.mxu0 0.0
    %206 = vmatpush1.msra.mxu0 0.0
    %207 = vmatprep.subr.mxu0 0.0
    %208 = vmatpush1.msra.mxu0 0.0
    %209 = vmatprep.subr.mxu0 0.0
    %210 = vmatpush1.msra.mxu0 0.0
    %211 = vmatprep.mubr.f32.mxu0 0.0
    %212 = vmatmul.mubr.f32.gmra.mrb[0].mxu0 %v142
    %v213 = vpop.f32.mrb[0].mxu0
    %v214 = vadd.f32 %v140, %v213
    %v215 = vpop.f32.mrb[0].mxu0
    %216 = vmatprep.mubr.f32.mxu0 0.0
    %217 = vmatmul.mubr.f32.gmra.mrb[0].mxu0 %v145
    %v218 = vpop.f32.mrb[0].mxu0
    %v219 = vadd.f32 %v140, %v218
    %v220 = vpop.f32.mrb[0].mxu0
    %221 = vdwg.mxu0
    %224 = vrot.lane.b32.xlu0 %v214, 96
    %v225 = vpop.permute.xlu0 %224
    %226 = vrot.lane.b32.xlu0 %v219, 96
    %v227 = vpop.permute.xlu0 %226
    %vm228 = vcmask 64512
    %v229 = vsel %vm228, %v214, 0
    %v231 = vsel %vm228, %v219, 0
    %v233 = vsel %vm228, %v225, 0
    %v235 = vsel %vm228, %v227, 0
    %237 = vmatprep.subr.mxu0 0.0
    %238 = vmatpush1.xpose.msra.mxu0 %v233
    %239 = vmatprep.subr.mxu0 0.0
    %240 = vmatpush1.xpose.msra.mxu0 %v235
    %241 = vmatprep.subr.mxu0 0.0
    %242 = vmatpush1.xpose.msra.mxu0 0.0
    %243 = vmatprep.subr.mxu0 0.0
    %244 = vmatpush1.xpose.msra.mxu0 0.0
    %245 = vmatprep.subr.mxu0 0.0
    %246 = vmatpush1.xpose.msra.mxu0 0.0
    %247 = vmatprep.subr.mxu0 0.0
    %248 = vmatpush1.xpose.msra.mxu0 0.0
    %249 = vmatprep.subr.mxu0 0.0
    %250 = vmatpush1.xpose.msra.mxu0 0.0
    %251 = vmatprep.subr.mxu0 0.0
    %252 = vmatpush1.xpose.msra.mxu0 0.0
    %253 = vmatprep.subr.mxu0 0.0
    %254 = vmatpush1.xpose.msra.mxu0 0.0
    %255 = vmatprep.subr.mxu0 0.0
    %256 = vmatpush1.xpose.msra.mxu0 0.0
    %257 = vmatprep.subr.mxu0 0.0
    %258 = vmatpush1.xpose.msra.mxu0 0.0
    %259 = vmatprep.subr.mxu0 0.0
    %260 = vmatpush1.xpose.msra.mxu0 0.0
    %261 = vmatprep.subr.mxu0 0.0
    %262 = vmatpush1.xpose.msra.mxu0 0.0
    %263 = vmatprep.subr.mxu0 0.0
    %264 = vmatpush1.xpose.msra.mxu0 0.0
    %265 = vmatprep.subr.mxu0 0.0
    %266 = vmatpush1.xpose.msra.mxu0 0.0
    %267 = vmatprep.subr.mxu0 0.0
    %268 = vmatpush1.xpose.msra.mxu0 0.0
    %269 = vmatprep.subr.mxu0 0.0
    %270 = vmatpush1.xpose.msra.mxu0 0.0
    %271 = vmatprep.subr.mxu0 0.0
    %272 = vmatpush1.xpose.msra.mxu0 0.0
    %273 = vmatprep.subr.mxu0 0.0
    %274 = vmatpush1.xpose.msra.mxu0 0.0
    %275 = vmatprep.subr.mxu0 0.0
    %276 = vmatpush1.xpose.msra.mxu0 0.0
    %277 = vmatprep.subr.mxu0 0.0
    %278 = vmatpush1.xpose.msra.mxu0 0.0
    %279 = vmatprep.subr.mxu0 0.0
    %280 = vmatpush1.xpose.msra.mxu0 0.0
    %281 = vmatprep.subr.mxu0 0.0
    %282 = vmatpush1.xpose.msra.mxu0 0.0
    %283 = vmatprep.subr.mxu0 0.0
    %284 = vmatpush1.xpose.msra.mxu0 0.0
    %285 = vmatprep.subr.mxu0 0.0
    %286 = vmatpush1.xpose.msra.mxu0 0.0
    %287 = vmatprep.subr.mxu0 0.0
    %288 = vmatpush1.xpose.msra.mxu0 0.0
    %289 = vmatprep.subr.mxu0 0.0
    %290 = vmatpush1.xpose.msra.mxu0 0.0
    %291 = vmatprep.subr.mxu0 0.0
    %292 = vmatpush1.xpose.msra.mxu0 0.0
    %293 = vmatprep.subr.mxu0 0.0
    %294 = vmatpush1.xpose.msra.mxu0 0.0
    %295 = vmatprep.subr.mxu0 0.0
    %296 = vmatpush1.xpose.msra.mxu0 0.0
    %297 = vmatprep.subr.mxu0 0.0
    %298 = vmatpush1.xpose.msra.mxu0 0.0
    %299 = vmatprep.subr.mxu0 0.0
    %300 = vmatpush1.xpose.msra.mxu0 0.0
    %301 = vmatprep.mubr.f32.mxu0 0.0
    %302 = vmatmul.mubr.f32.gmra.mrb[0].mxu0 %v229
    %v303 = vpop.f32.mrb[0].mxu0
    %v304 = vadd.f32 %v61, %v303
    %v305 = vpop.f32.mrb[0].mxu0
    %306 = vmatprep.mubr.f32.mxu0 0.0
    %307 = vmatmul.mubr.f32.gmra.mrb[0].mxu0 %v231
    %v308 = vpop.f32.mrb[0].mxu0
    %v309 = vadd.f32 %v62, %v308
    %v310 = vpop.f32.mrb[0].mxu0
    %311 = vdwg.mxu0
    %vm312 = vcmask 130048
    %v313 = vsel %vm312, %v304, -inf
    %314 = vmax.xlane.f32.xlu0 %v313
    %v315 = vpop.xlane.xlu0 %314
    %v316 = vsel %vm312, %v309, -inf
    %317 = vmax.xlane.f32.xlu0 %v316
    %v318 = vpop.xlane.xlu0 %317
    %v319 = vsub.f32 %v304, %v315
    %v320 = vsub.f32 %v309, %v318
    %v321 = vmul.f32 %v319, 1.442695
    %v322 = vpow.pop %v321
    %v323 = vmul.f32 %v320, 1.442695
    %v324 = vpow.pop %v323
    %v325 = vsel %vm312, %v322, 0.0
    %326 = vadd.xlane.f32.xlu0 %v325
    %v327 = vpop.xlane.xlu0 %326
    %v328 = vsel %vm312, %v324, 0.0
    %329 = vadd.xlane.f32.xlu0 %v328
    %v330 = vpop.xlane.xlu0 %329
    %v331 = vrcp.pop %v327
    %v332 = vrcp.pop %v330
    %v333 = vmul.f32 %v322, %v331
    %v334 = vmul.f32 %v324, %v332
    %335 = vrot.lane.b32.xlu0 %v214, 64
    %v336 = vpop.permute.xlu0 %335
    %337 = vrot.lane.b32.xlu0 %v219, 64
    %v338 = vpop.permute.xlu0 %337
    %v342 = vsel %vm312, %v333, 0
    %v345 = vsel %vm312, %v334, 0
    %347 = vmatprep.subr.mxu0 0.0
    %348 = vmatpush1.msra.mxu0 %v336
    %349 = vmatprep.subr.mxu0 0.0
    %350 = vmatpush1.msra.mxu0 %v338
    %351 = vmatprep.subr.mxu0 0.0
    %352 = vmatpush1.msra.mxu0 0.0
    %353 = vmatprep.subr.mxu0 0.0
    %354 = vmatpush1.msra.mxu0 0.0
    %355 = vmatprep.subr.mxu0 0.0
    %356 = vmatpush1.msra.mxu0 0.0
    %357 = vmatprep.subr.mxu0 0.0
    %358 = vmatpush1.msra.mxu0 0.0
    %359 = vmatprep.subr.mxu0 0.0
    %360 = vmatpush1.msra.mxu0 0.0
    %361 = vmatprep.subr.mxu0 0.0
    %362 = vmatpush1.msra.mxu0 0.0
    %363 = vmatprep.subr.mxu0 0.0
    %364 = vmatpush1.msra.mxu0 0.0
    %365 = vmatprep.subr.mxu0 0.0
    %366 = vmatpush1.msra.mxu0 0.0
    %367 = vmatprep.subr.mxu0 0.0
    %368 = vmatpush1.msra.mxu0 0.0
    %369 = vmatprep.subr.mxu0 0.0
    %370 = vmatpush1.msra.mxu0 0.0
    %371 = vmatprep.subr.mxu0 0.0
    %372 = vmatpush1.msra.mxu0 0.0
    %373 = vmatprep.subr.mxu0 0.0
    %374 = vmatpush1.msra.mxu0 0.0
    %375 = vmatprep.subr.mxu0 0.0
    %376 = vmatpush1.msra.mxu0 0.0
    %377 = vmatprep.subr.mxu0 0.0
    %378 = vmatpush1.msra.mxu0 0.0
    %379 = vmatprep.subr.mxu0 0.0
    %380 = vmatpush1.msra.mxu0 0.0
    %381 = vmatprep.subr.mxu0 0.0
    %382 = vmatpush1.msra.mxu0 0.0
    %383 = vmatprep.subr.mxu0 0.0
    %384 = vmatpush1.msra.mxu0 0.0
    %385 = vmatprep.subr.mxu0 0.0
    %386 = vmatpush1.msra.mxu0 0.0
    %387 = vmatprep.subr.mxu0 0.0
    %388 = vmatpush1.msra.mxu0 0.0
    %389 = vmatprep.subr.mxu0 0.0
    %390 = vmatpush1.msra.mxu0 0.0
    %391 = vmatprep.subr.mxu0 0.0
    %392 = vmatpush1.msra.mxu0 0.0
    %393 = vmatprep.subr.mxu0 0.0
    %394 = vmatpush1.msra.mxu0 0.0
    %395 = vmatprep.subr.mxu0 0.0
    %396 = vmatpush1.msra.mxu0 0.0
    %397 = vmatprep.subr.mxu0 0.0
    %398 = vmatpush1.msra.mxu0 0.0
    %399 = vmatprep.subr.mxu0 0.0
    %400 = vmatpush1.msra.mxu0 0.0
    %401 = vmatprep.subr.mxu0 0.0
    %402 = vmatpush1.msra.mxu0 0.0
    %403 = vmatprep.subr.mxu0 0.0
    %404 = vmatpush1.msra.mxu0 0.0
    %405 = vmatprep.subr.mxu0 0.0
    %406 = vmatpush1.msra.mxu0 0.0
    %407 = vmatprep.subr.mxu0 0.0
    %408 = vmatpush1.msra.mxu0 0.0
    %409 = vmatprep.subr.mxu0 0.0
    %410 = vmatpush1.msra.mxu0 0.0
    %411 = vmatprep.mubr.f32.mxu0 0.0
    %412 = vmatmul.mubr.f32.gmra.mrb[0].mxu0 %v342
    %v413 = vpop.f32.mrb[0].mxu0
    %v414 = vadd.f32 0.0, %v413
    %v415 = vpop.f32.mrb[0].mxu0
    %416 = vmatprep.mubr.f32.mxu0 0.0
    %417 = vmatmul.mubr.f32.gmra.mrb[0].mxu0 %v345
    %v418 = vpop.f32.mrb[0].mxu0
    %v419 = vadd.f32 0.0, %v418
    %v420 = vpop.f32.mrb[0].mxu0
    %421 = vdwg.mxu0
    %422 = vrot.lane.b32.xlu0 %v214, 120
    %v423 = vpop.permute.xlu0 %422
    %424 = vrot.lane.b32.xlu0 %v219, 120
    %v425 = vpop.permute.xlu0 %424
    %426 = vrot.lane.b32.xlu0 %v214, 88
    %v427 = vpop.permute.xlu0 %426
    %428 = vrot.lane.b32.xlu0 %v219, 88
    %v429 = vpop.permute.xlu0 %428
    %v430 = vsel %vm228, %v423, 0
    %v432 = vsel %vm228, %v425, 0
    %v434 = vsel %vm228, %v427, 0
    %v436 = vsel %vm228, %v429, 0
    %438 = vmatprep.subr.mxu0 0.0
    %439 = vmatpush1.xpose.msra.mxu0 %v434
    %440 = vmatprep.subr.mxu0 0.0
    %441 = vmatpush1.xpose.msra.mxu0 %v436
    %442 = vmatprep.subr.mxu0 0.0
    %443 = vmatpush1.xpose.msra.mxu0 0.0
    %444 = vmatprep.subr.mxu0 0.0
    %445 = vmatpush1.xpose.msra.mxu0 0.0
    %446 = vmatprep.subr.mxu0 0.0
    %447 = vmatpush1.xpose.msra.mxu0 0.0
    %448 = vmatprep.subr.mxu0 0.0
    %449 = vmatpush1.xpose.msra.mxu0 0.0
    %450 = vmatprep.subr.mxu0 0.0
    %451 = vmatpush1.xpose.msra.mxu0 0.0
    %452 = vmatprep.subr.mxu0 0.0
    %453 = vmatpush1.xpose.msra.mxu0 0.0
    %454 = vmatprep.subr.mxu0 0.0
    %455 = vmatpush1.xpose.msra.mxu0 0.0
    %456 = vmatprep.subr.mxu0 0.0
    %457 = vmatpush1.xpose.msra.mxu0 0.0
    %458 = vmatprep.subr.mxu0 0.0
    %459 = vmatpush1.xpose.msra.mxu0 0.0
    %460 = vmatprep.subr.mxu0 0.0
    %461 = vmatpush1.xpose.msra.mxu0 0.0
    %462 = vmatprep.subr.mxu0 0.0
    %463 = vmatpush1.xpose.msra.mxu0 0.0
    %464 = vmatprep.subr.mxu0 0.0
    %465 = vmatpush1.xpose.msra.mxu0 0.0
    %466 = vmatprep.subr.mxu0 0.0
    %467 = vmatpush1.xpose.msra.mxu0 0.0
    %468 = vmatprep.subr.mxu0 0.0
    %469 = vmatpush1.xpose.msra.mxu0 0.0
    %470 = vmatprep.subr.mxu0 0.0
    %471 = vmatpush1.xpose.msra.mxu0 0.0
    %472 = vmatprep.subr.mxu0 0.0
    %473 = vmatpush1.xpose.msra.mxu0 0.0
    %474 = vmatprep.subr.mxu0 0.0
    %475 = vmatpush1.xpose.msra.mxu0 0.0
    %476 = vmatprep.subr.mxu0 0.0
    %477 = vmatpush1.xpose.msra.mxu0 0.0
    %478 = vmatprep.subr.mxu0 0.0
    %479 = vmatpush1.xpose.msra.mxu0 0.0
    %480 = vmatprep.subr.mxu0 0.0
    %481 = vmatpush1.xpose.msra.mxu0 0.0
    %482 = vmatprep.subr.mxu0 0.0
    %483 = vmatpush1.xpose.msra.mxu0 0.0
    %484 = vmatprep.subr.mxu0 0.0
    %485 = vmatpush1.xpose.msra.mxu0 0.0
    %486 = vmatprep.subr.mxu0 0.0
    %487 = vmatpush1.xpose.msra.mxu0 0.0
    %488 = vmatprep.subr.mxu0 0.0
    %489 = vmatpush1.xpose.msra.mxu0 0.0
    %490 = vmatprep.subr.mxu0 0.0
    %491 = vmatpush1.xpose.msra.mxu0 0.0
    %492 = vmatprep.subr.mxu0 0.0
    %493 = vmatpush1.xpose.msra.mxu0 0.0
    %494 = vmatprep.subr.mxu0 0.0
    %495 = vmatpush1.xpose.msra.mxu0 0.0
    %496 = vmatprep.subr.mxu0 0.0
    %497 = vmatpush1.xpose.msra.mxu0 0.0
    %498 = vmatprep.subr.mxu0 0.0
    %499 = vmatpush1.xpose.msra.mxu0 0.0
    %500 = vmatprep.subr.mxu0 0.0
    %501 = vmatpush1.xpose.msra.mxu0 0.0
    %502 = vmatprep.mubr.f32.mxu0 0.0
    %503 = vmatmul.mubr.f32.gmra.mrb[0].mxu0 %v430
    %v504 = vpop.f32.mrb[0].mxu0
    %v505 = vadd.f32 %v61, %v504
    %v506 = vpop.f32.mrb[0].mxu0
    %507 = vmatprep.mubr.f32.mxu0 0.0
    %508 = vmatmul.mubr.f32.gmra.mrb[0].mxu0 %v432
    %v509 = vpop.f32.mrb[0].mxu0
    %v510 = vadd.f32 %v62, %v509
    %v511 = vpop.f32.mrb[0].mxu0
    %512 = vdwg.mxu0
    %v513 = vsel %vm312, %v505, -inf
    %514 = vmax.xlane.f32.xlu0 %v513
    %v515 = vpop.xlane.xlu0 %514
    %v516 = vsel %vm312, %v510, -inf
    %517 = vmax.xlane.f32.xlu0 %v516
    %v518 = vpop.xlane.xlu0 %517
    %v519 = vsub.f32 %v505, %v515
    %v520 = vsub.f32 %v510, %v518
    %v521 = vmul.f32 %v519, 1.442695
    %v522 = vpow.pop %v521
    %v523 = vmul.f32 %v520, 1.442695
    %v524 = vpow.pop %v523
    %v525 = vsel %vm312, %v522, 0.0
    %526 = vadd.xlane.f32.xlu0 %v525
    %v527 = vpop.xlane.xlu0 %526
    %v528 = vsel %vm312, %v524, 0.0
    %529 = vadd.xlane.f32.xlu0 %v528
    %v530 = vpop.xlane.xlu0 %529
    %v531 = vrcp.pop %v527
    %v532 = vrcp.pop %v530
    %v533 = vmul.f32 %v522, %v531
    %v534 = vmul.f32 %v524, %v532
    %535 = vrot.lane.b32.xlu0 %v214, 56
    %v536 = vpop.permute.xlu0 %535
    %537 = vrot.lane.b32.xlu0 %v219, 56
    %v538 = vpop.permute.xlu0 %537
    %v542 = vsel %vm312, %v533, 0
    %v545 = vsel %vm312, %v534, 0
    %547 = vmatprep.subr.mxu0 0.0
    %548 = vmatpush1.msra.mxu0 %v536
    %549 = vmatprep.subr.mxu0 0.0
    %550 = vmatpush1.msra.mxu0 %v538
    %551 = vmatprep.subr.mxu0 0.0
    %552 = vmatpush1.msra.mxu0 0.0
    %553 = vmatprep.subr.mxu0 0.0
    %554 = vmatpush1.msra.mxu0 0.0
    %555 = vmatprep.subr.mxu0 0.0
    %556 = vmatpush1.msra.mxu0 0.0
    %557 = vmatprep.subr.mxu0 0.0
    %558 = vmatpush1.msra.mxu0 0.0
    %559 = vmatprep.subr.mxu0 0.0
    %560 = vmatpush1.msra.mxu0 0.0
    %561 = vmatprep.subr.mxu0 0.0
    %562 = vmatpush1.msra.mxu0 0.0
    %563 = vmatprep.subr.mxu0 0.0
    %564 = vmatpush1.msra.mxu0 0.0
    %565 = vmatprep.subr.mxu0 0.0
    %566 = vmatpush1.msra.mxu0 0.0
    %567 = vmatprep.subr.mxu0 0.0
    %568 = vmatpush1.msra.mxu0 0.0
    %569 = vmatprep.subr.mxu0 0.0
    %570 = vmatpush1.msra.mxu0 0.0
    %571 = vmatprep.subr.mxu0 0.0
    %572 = vmatpush1.msra.mxu0 0.0
    %573 = vmatprep.subr.mxu0 0.0
    %574 = vmatpush1.msra.mxu0 0.0
    %575 = vmatprep.subr.mxu0 0.0
    %576 = vmatpush1.msra.mxu0 0.0
    %577 = vmatprep.subr.mxu0 0.0
    %578 = vmatpush1.msra.mxu0 0.0
    %579 = vmatprep.subr.mxu0 0.0
    %580 = vmatpush1.msra.mxu0 0.0
    %581 = vmatprep.subr.mxu0 0.0
    %582 = vmatpush1.msra.mxu0 0.0
    %583 = vmatprep.subr.mxu0 0.0
    %584 = vmatpush1.msra.mxu0 0.0
    %585 = vmatprep.subr.mxu0 0.0
    %586 = vmatpush1.msra.mxu0 0.0
    %587 = vmatprep.subr.mxu0 0.0
    %588 = vmatpush1.msra.mxu0 0.0
    %589 = vmatprep.subr.mxu0 0.0
    %590 = vmatpush1.msra.mxu0 0.0
    %591 = vmatprep.subr.mxu0 0.0
    %592 = vmatpush1.msra.mxu0 0.0
    %593 = vmatprep.subr.mxu0 0.0
    %594 = vmatpush1.msra.mxu0 0.0
    %595 = vmatprep.subr.mxu0 0.0
    %596 = vmatpush1.msra.mxu0 0.0
    %597 = vmatprep.subr.mxu0 0.0
    %598 = vmatpush1.msra.mxu0 0.0
    %599 = vmatprep.subr.mxu0 0.0
    %600 = vmatpush1.msra.mxu0 0.0
    %601 = vmatprep.subr.mxu0 0.0
    %602 = vmatpush1.msra.mxu0 0.0
    %603 = vmatprep.subr.mxu0 0.0
    %604 = vmatpush1.msra.mxu0 0.0
    %605 = vmatprep.subr.mxu0 0.0
    %606 = vmatpush1.msra.mxu0 0.0
    %607 = vmatprep.subr.mxu0 0.0
    %608 = vmatpush1.msra.mxu0 0.0
    %609 = vmatprep.subr.mxu0 0.0
    %610 = vmatpush1.msra.mxu0 0.0
    %611 = vmatprep.mubr.f32.mxu0 0.0
    %612 = vmatmul.mubr.f32.gmra.mrb[0].mxu0 %v542
    %v613 = vpop.f32.mrb[0].mxu0
    %v614 = vadd.f32 0.0, %v613
    %v615 = vpop.f32.mrb[0].mxu0
    %616 = vmatprep.mubr.f32.mxu0 0.0
    %617 = vmatmul.mubr.f32.gmra.mrb[0].mxu0 %v545
    %v618 = vpop.f32.mrb[0].mxu0
    %v619 = vadd.f32 0.0, %v618
    %v620 = vpop.f32.mrb[0].mxu0
    %621 = vdwg.mxu0
    %622 = vrot.lane.b32.xlu0 %v214, 112
    %v623 = vpop.permute.xlu0 %622
    %624 = vrot.lane.b32.xlu0 %v219, 112
    %v625 = vpop.permute.xlu0 %624
    %626 = vrot.lane.b32.xlu0 %v214, 80
    %v627 = vpop.permute.xlu0 %626
    %628 = vrot.lane.b32.xlu0 %v219, 80
    %v629 = vpop.permute.xlu0 %628
    %v630 = vsel %vm228, %v623, 0
    %v632 = vsel %vm228, %v625, 0
    %v634 = vsel %vm228, %v627, 0
    %v636 = vsel %vm228, %v629, 0
    %638 = vmatprep.subr.mxu0 0.0
    %639 = vmatpush1.xpose.msra.mxu0 %v634
    %640 = vmatprep.subr.mxu0 0.0
    %641 = vmatpush1.xpose.msra.mxu0 %v636
    %642 = vmatprep.subr.mxu0 0.0
    %643 = vmatpush1.xpose.msra.mxu0 0.0
    %644 = vmatprep.subr.mxu0 0.0
    %645 = vmatpush1.xpose.msra.mxu0 0.0
    %646 = vmatprep.subr.mxu0 0.0
    %647 = vmatpush1.xpose.msra.mxu0 0.0
    %648 = vmatprep.subr.mxu0 0.0
    %649 = vmatpush1.xpose.msra.mxu0 0.0
    %650 = vmatprep.subr.mxu0 0.0
    %651 = vmatpush1.xpose.msra.mxu0 0.0
    %652 = vmatprep.subr.mxu0 0.0
    %653 = vmatpush1.xpose.msra.mxu0 0.0
    %654 = vmatprep.subr.mxu0 0.0
    %655 = vmatpush1.xpose.msra.mxu0 0.0
    %656 = vmatprep.subr.mxu0 0.0
    %657 = vmatpush1.xpose.msra.mxu0 0.0
    %658 = vmatprep.subr.mxu0 0.0
    %659 = vmatpush1.xpose.msra.mxu0 0.0
    %660 = vmatprep.subr.mxu0 0.0
    %661 = vmatpush1.xpose.msra.mxu0 0.0
    %662 = vmatprep.subr.mxu0 0.0
    %663 = vmatpush1.xpose.msra.mxu0 0.0
    %664 = vmatprep.subr.mxu0 0.0
    %665 = vmatpush1.xpose.msra.mxu0 0.0
    %666 = vmatprep.subr.mxu0 0.0
    %667 = vmatpush1.xpose.msra.mxu0 0.0
    %668 = vmatprep.subr.mxu0 0.0
    %669 = vmatpush1.xpose.msra.mxu0 0.0
    %670 = vmatprep.subr.mxu0 0.0
    %671 = vmatpush1.xpose.msra.mxu0 0.0
    %672 = vmatprep.subr.mxu0 0.0
    %673 = vmatpush1.xpose.msra.mxu0 0.0
    %674 = vmatprep.subr.mxu0 0.0
    %675 = vmatpush1.xpose.msra.mxu0 0.0
    %676 = vmatprep.subr.mxu0 0.0
    %677 = vmatpush1.xpose.msra.mxu0 0.0
    %678 = vmatprep.subr.mxu0 0.0
    %679 = vmatpush1.xpose.msra.mxu0 0.0
    %680 = vmatprep.subr.mxu0 0.0
    %681 = vmatpush1.xpose.msra.mxu0 0.0
    %682 = vmatprep.subr.mxu0 0.0
    %683 = vmatpush1.xpose.msra.mxu0 0.0
    %684 = vmatprep.subr.mxu0 0.0
    %685 = vmatpush1.xpose.msra.mxu0 0.0
    %686 = vmatprep.subr.mxu0 0.0
    %687 = vmatpush1.xpose.msra.mxu0 0.0
    %688 = vmatprep.subr.mxu0 0.0
    %689 = vmatpush1.xpose.msra.mxu0 0.0
    %690 = vmatprep.subr.mxu0 0.0
    %691 = vmatpush1.xpose.msra.mxu0 0.0
    %692 = vmatprep.subr.mxu0 0.0
    %693 = vmatpush1.xpose.msra.mxu0 0.0
    %694 = vmatprep.subr.mxu0 0.0
    %695 = vmatpush1.xpose.msra.mxu0 0.0
    %696 = vmatprep.subr.mxu0 0.0
    %697 = vmatpush1.xpose.msra.mxu0 0.0
    %698 = vmatprep.subr.mxu0 0.0
    %699 = vmatpush1.xpose.msra.mxu0 0.0
    %700 = vmatprep.subr.mxu0 0.0
    %701 = vmatpush1.xpose.msra.mxu0 0.0
    %702 = vmatprep.mubr.f32.mxu0 0.0
    %703 = vmatmul.mubr.f32.gmra.mrb[0].mxu0 %v630
    %v704 = vpop.f32.mrb[0].mxu0
    %v705 = vadd.f32 %v61, %v704
    %v706 = vpop.f32.mrb[0].mxu0
    %707 = vmatprep.mubr.f32.mxu0 0.0
    %708 = vmatmul.mubr.f32.gmra.mrb[0].mxu0 %v632
    %v709 = vpop.f32.mrb[0].mxu0
    %v710 = vadd.f32 %v62, %v709
    %v711 = vpop.f32.mrb[0].mxu0
    %712 = vdwg.mxu0
    %v713 = vsel %vm312, %v705, -inf
    %714 = vmax.xlane.f32.xlu0 %v713
    %v715 = vpop.xlane.xlu0 %714
    %v716 = vsel %vm312, %v710, -inf
    %717 = vmax.xlane.f32.xlu0 %v716
    %v718 = vpop.xlane.xlu0 %717
    %v719 = vsub.f32 %v705, %v715
    %v720 = vsub.f32 %v710, %v718
    %v721 = vmul.f32 %v719, 1.442695
    %v722 = vpow.pop %v721
    %v723 = vmul.f32 %v720, 1.442695
    %v724 = vpow.pop %v723
    %v725 = vsel %vm312, %v722, 0.0
    %726 = vadd.xlane.f32.xlu0 %v725
    %v727 = vpop.xlane.xlu0 %726
    %v728 = vsel %vm312, %v724, 0.0
    %729 = vadd.xlane.f32.xlu0 %v728
    %v730 = vpop.xlane.xlu0 %729
    %v731 = vrcp.pop %v727
    %v732 = vrcp.pop %v730
    %v733 = vmul.f32 %v722, %v731
    %v734 = vmul.f32 %v724, %v732
    %735 = vrot.lane.b32.xlu0 %v214, 48
    %v736 = vpop.permute.xlu0 %735
    %737 = vrot.lane.b32.xlu0 %v219, 48
    %v738 = vpop.permute.xlu0 %737
    %v742 = vsel %vm312, %v733, 0
    %v745 = vsel %vm312, %v734, 0
    %747 = vmatprep.subr.mxu0 0.0
    %748 = vmatpush1.msra.mxu0 %v736
    %749 = vmatprep.subr.mxu0 0.0
    %750 = vmatpush1.msra.mxu0 %v738
    %751 = vmatprep.subr.mxu0 0.0
    %752 = vmatpush1.msra.mxu0 0.0
    %753 = vmatprep.subr.mxu0 0.0
    %754 = vmatpush1.msra.mxu0 0.0
    %755 = vmatprep.subr.mxu0 0.0
    %756 = vmatpush1.msra.mxu0 0.0
    %757 = vmatprep.subr.mxu0 0.0
    %758 = vmatpush1.msra.mxu0 0.0
    %759 = vmatprep.subr.mxu0 0.0
    %760 = vmatpush1.msra.mxu0 0.0
    %761 = vmatprep.subr.mxu0 0.0
    %762 = vmatpush1.msra.mxu0 0.0
    %763 = vmatprep.subr.mxu0 0.0
    %764 = vmatpush1.msra.mxu0 0.0
    %765 = vmatprep.subr.mxu0 0.0
    %766 = vmatpush1.msra.mxu0 0.0
    %767 = vmatprep.subr.mxu0 0.0
    %768 = vmatpush1.msra.mxu0 0.0
    %769 = vmatprep.subr.mxu0 0.0
    %770 = vmatpush1.msra.mxu0 0.0
    %771 = vmatprep.subr.mxu0 0.0
    %772 = vmatpush1.msra.mxu0 0.0
    %773 = vmatprep.subr.mxu0 0.0
    %774 = vmatpush1.msra.mxu0 0.0
    %775 = vmatprep.subr.mxu0 0.0
    %776 = vmatpush1.msra.mxu0 0.0
    %777 = vmatprep.subr.mxu0 0.0
    %778 = vmatpush1.msra.mxu0 0.0
    %779 = vmatprep.subr.mxu0 0.0
    %780 = vmatpush1.msra.mxu0 0.0
    %781 = vmatprep.subr.mxu0 0.0
    %782 = vmatpush1.msra.mxu0 0.0
    %783 = vmatprep.subr.mxu0 0.0
    %784 = vmatpush1.msra.mxu0 0.0
    %785 = vmatprep.subr.mxu0 0.0
    %786 = vmatpush1.msra.mxu0 0.0
    %787 = vmatprep.subr.mxu0 0.0
    %788 = vmatpush1.msra.mxu0 0.0
    %789 = vmatprep.subr.mxu0 0.0
    %790 = vmatpush1.msra.mxu0 0.0
    %791 = vmatprep.subr.mxu0 0.0
    %792 = vmatpush1.msra.mxu0 0.0
    %793 = vmatprep.subr.mxu0 0.0
    %794 = vmatpush1.msra.mxu0 0.0
    %795 = vmatprep.subr.mxu0 0.0
    %796 = vmatpush1.msra.mxu0 0.0
    %797 = vmatprep.subr.mxu0 0.0
    %798 = vmatpush1.msra.mxu0 0.0
    %799 = vmatprep.subr.mxu0 0.0
    %800 = vmatpush1.msra.mxu0 0.0
    %801 = vmatprep.subr.mxu0 0.0
    %802 = vmatpush1.msra.mxu0 0.0
    %803 = vmatprep.subr.mxu0 0.0
    %804 = vmatpush1.msra.mxu0 0.0
    %805 = vmatprep.subr.mxu0 0.0
    %806 = vmatpush1.msra.mxu0 0.0
    %807 = vmatprep.subr.mxu0 0.0
    %808 = vmatpush1.msra.mxu0 0.0
    %809 = vmatprep.subr.mxu0 0.0
    %810 = vmatpush1.msra.mxu0 0.0
    %811 = vmatprep.mubr.f32.mxu0 0.0
    %812 = vmatmul.mubr.f32.gmra.mrb[0].mxu0 %v742
    %v813 = vpop.f32.mrb[0].mxu0
    %v814 = vadd.f32 0.0, %v813
    %v815 = vpop.f32.mrb[0].mxu0
    %816 = vmatprep.mubr.f32.mxu0 0.0
    %817 = vmatmul.mubr.f32.gmra.mrb[0].mxu0 %v745
    %v818 = vpop.f32.mrb[0].mxu0
    %v819 = vadd.f32 0.0, %v818
    %v820 = vpop.f32.mrb[0].mxu0
    %821 = vdwg.mxu0
    %822 = vrot.lane.b32.xlu0 %v214, 104
    %v823 = vpop.permute.xlu0 %822
    %824 = vrot.lane.b32.xlu0 %v219, 104
    %v825 = vpop.permute.xlu0 %824
    %826 = vrot.lane.b32.xlu0 %v214, 72
    %v827 = vpop.permute.xlu0 %826
    %828 = vrot.lane.b32.xlu0 %v219, 72
    %v829 = vpop.permute.xlu0 %828
    %v830 = vsel %vm228, %v823, 0
    %v832 = vsel %vm228, %v825, 0
    %v834 = vsel %vm228, %v827, 0
    %v836 = vsel %vm228, %v829, 0
    %838 = vmatprep.subr.mxu0 0.0
    %839 = vmatpush1.xpose.msra.mxu0 %v834
    %840 = vmatprep.subr.mxu0 0.0
    %841 = vmatpush1.xpose.msra.mxu0 %v836
    %842 = vmatprep.subr.mxu0 0.0
    %843 = vmatpush1.xpose.msra.mxu0 0.0
    %844 = vmatprep.subr.mxu0 0.0
    %845 = vmatpush1.xpose.msra.mxu0 0.0
    %846 = vmatprep.subr.mxu0 0.0
    %847 = vmatpush1.xpose.msra.mxu0 0.0
    %848 = vmatprep.subr.mxu0 0.0
    %849 = vmatpush1.xpose.msra.mxu0 0.0
    %850 = vmatprep.subr.mxu0 0.0
    %851 = vmatpush1.xpose.msra.mxu0 0.0
    %852 = vmatprep.subr.mxu0 0.0
    %853 = vmatpush1.xpose.msra.mxu0 0.0
    %854 = vmatprep.subr.mxu0 0.0
    %855 = vmatpush1.xpose.msra.mxu0 0.0
    %856 = vmatprep.subr.mxu0 0.0
    %857 = vmatpush1.xpose.msra.mxu0 0.0
    %858 = vmatprep.subr.mxu0 0.0
    %859 = vmatpush1.xpose.msra.mxu0 0.0
    %860 = vmatprep.subr.mxu0 0.0
    %861 = vmatpush1.xpose.msra.mxu0 0.0
    %862 = vmatprep.subr.mxu0 0.0
    %863 = vmatpush1.xpose.msra.mxu0 0.0
    %864 = vmatprep.subr.mxu0 0.0
    %865 = vmatpush1.xpose.msra.mxu0 0.0
    %866 = vmatprep.subr.mxu0 0.0
    %867 = vmatpush1.xpose.msra.mxu0 0.0
    %868 = vmatprep.subr.mxu0 0.0
    %869 = vmatpush1.xpose.msra.mxu0 0.0
    %870 = vmatprep.subr.mxu0 0.0
    %871 = vmatpush1.xpose.msra.mxu0 0.0
    %872 = vmatprep.subr.mxu0 0.0
    %873 = vmatpush1.xpose.msra.mxu0 0.0
    %874 = vmatprep.subr.mxu0 0.0
    %875 = vmatpush1.xpose.msra.mxu0 0.0
    %876 = vmatprep.subr.mxu0 0.0
    %877 = vmatpush1.xpose.msra.mxu0 0.0
    %878 = vmatprep.subr.mxu0 0.0
    %879 = vmatpush1.xpose.msra.mxu0 0.0
    %880 = vmatprep.subr.mxu0 0.0
    %881 = vmatpush1.xpose.msra.mxu0 0.0
    %882 = vmatprep.subr.mxu0 0.0
    %883 = vmatpush1.xpose.msra.mxu0 0.0
    %884 = vmatprep.subr.mxu0 0.0
    %885 = vmatpush1.xpose.msra.mxu0 0.0
    %886 = vmatprep.subr.mxu0 0.0
    %887 = vmatpush1.xpose.msra.mxu0 0.0
    %888 = vmatprep.subr.mxu0 0.0
    %889 = vmatpush1.xpose.msra.mxu0 0.0
    %890 = vmatprep.subr.mxu0 0.0
    %891 = vmatpush1.xpose.msra.mxu0 0.0
    %892 = vmatprep.subr.mxu0 0.0
    %893 = vmatpush1.xpose.msra.mxu0 0.0
    %894 = vmatprep.subr.mxu0 0.0
    %895 = vmatpush1.xpose.msra.mxu0 0.0
    %896 = vmatprep.subr.mxu0 0.0
    %897 = vmatpush1.xpose.msra.mxu0 0.0
    %898 = vmatprep.subr.mxu0 0.0
    %899 = vmatpush1.xpose.msra.mxu0 0.0
    %900 = vmatprep.subr.mxu0 0.0
    %901 = vmatpush1.xpose.msra.mxu0 0.0
    %902 = vmatprep.mubr.f32.mxu0 0.0
    %903 = vmatmul.mubr.f32.gmra.mrb[0].mxu0 %v830
    %v904 = vpop.f32.mrb[0].mxu0
    %v905 = vadd.f32 %v61, %v904
    %v906 = vpop.f32.mrb[0].mxu0
    %907 = vmatprep.mubr.f32.mxu0 0.0
    %908 = vmatmul.mubr.f32.gmra.mrb[0].mxu0 %v832
    %v909 = vpop.f32.mrb[0].mxu0
    %v910 = vadd.f32 %v62, %v909
    %v911 = vpop.f32.mrb[0].mxu0
    %912 = vdwg.mxu0
    %v913 = vsel %vm312, %v905, -inf
    %914 = vmax.xlane.f32.xlu0 %v913
    %v915 = vpop.xlane.xlu0 %914
    %v916 = vsel %vm312, %v910, -inf
    %917 = vmax.xlane.f32.xlu0 %v916
    %v918 = vpop.xlane.xlu0 %917
    %v919 = vsub.f32 %v905, %v915
    %v920 = vsub.f32 %v910, %v918
    %v921 = vmul.f32 %v919, 1.442695
    %v922 = vpow.pop %v921
    %v923 = vmul.f32 %v920, 1.442695
    %v924 = vpow.pop %v923
    %v925 = vsel %vm312, %v922, 0.0
    %926 = vadd.xlane.f32.xlu0 %v925
    %v927 = vpop.xlane.xlu0 %926
    %v928 = vsel %vm312, %v924, 0.0
    %929 = vadd.xlane.f32.xlu0 %v928
    %v930 = vpop.xlane.xlu0 %929
    %v931 = vrcp.pop %v927
    %v932 = vrcp.pop %v930
    %v933 = vmul.f32 %v922, %v931
    %v934 = vmul.f32 %v924, %v932
    %935 = vrot.lane.b32.xlu0 %v214, 40
    %v936 = vpop.permute.xlu0 %935
    %937 = vrot.lane.b32.xlu0 %v219, 40
    %v938 = vpop.permute.xlu0 %937
    %v942 = vsel %vm312, %v933, 0
    %v945 = vsel %vm312, %v934, 0
    %947 = vmatprep.subr.mxu0 0.0
    %948 = vmatpush1.msra.mxu0 %v936
    %949 = vmatprep.subr.mxu0 0.0
    %950 = vmatpush1.msra.mxu0 %v938
    %951 = vmatprep.subr.mxu0 0.0
    %952 = vmatpush1.msra.mxu0 0.0
    %953 = vmatprep.subr.mxu0 0.0
    %954 = vmatpush1.msra.mxu0 0.0
    %955 = vmatprep.subr.mxu0 0.0
    %956 = vmatpush1.msra.mxu0 0.0
    %957 = vmatprep.subr.mxu0 0.0
    %958 = vmatpush1.msra.mxu0 0.0
    %959 = vmatprep.subr.mxu0 0.0
    %960 = vmatpush1.msra.mxu0 0.0
    %961 = vmatprep.subr.mxu0 0.0
    %962 = vmatpush1.msra.mxu0 0.0
    %963 = vmatprep.subr.mxu0 0.0
    %964 = vmatpush1.msra.mxu0 0.0
    %965 = vmatprep.subr.mxu0 0.0
    %966 = vmatpush1.msra.mxu0 0.0
    %967 = vmatprep.subr.mxu0 0.0
    %968 = vmatpush1.msra.mxu0 0.0
    %969 = vmatprep.subr.mxu0 0.0
    %970 = vmatpush1.msra.mxu0 0.0
    %971 = vmatprep.subr.mxu0 0.0
    %972 = vmatpush1.msra.mxu0 0.0
    %973 = vmatprep.subr.mxu0 0.0
    %974 = vmatpush1.msra.mxu0 0.0
    %975 = vmatprep.subr.mxu0 0.0
    %976 = vmatpush1.msra.mxu0 0.0
    %977 = vmatprep.subr.mxu0 0.0
    %978 = vmatpush1.msra.mxu0 0.0
    %979 = vmatprep.subr.mxu0 0.0
    %980 = vmatpush1.msra.mxu0 0.0
    %981 = vmatprep.subr.mxu0 0.0
    %982 = vmatpush1.msra.mxu0 0.0
    %983 = vmatprep.subr.mxu0 0.0
    %984 = vmatpush1.msra.mxu0 0.0
    %985 = vmatprep.subr.mxu0 0.0
    %986 = vmatpush1.msra.mxu0 0.0
    %987 = vmatprep.subr.mxu0 0.0
    %988 = vmatpush1.msra.mxu0 0.0
    %989 = vmatprep.subr.mxu0 0.0
    %990 = vmatpush1.msra.mxu0 0.0
    %991 = vmatprep.subr.mxu0 0.0
    %992 = vmatpush1.msra.mxu0 0.0
    %993 = vmatprep.subr.mxu0 0.0
    %994 = vmatpush1.msra.mxu0 0.0
    %995 = vmatprep.subr.mxu0 0.0
    %996 = vmatpush1.msra.mxu0 0.0
    %997 = vmatprep.subr.mxu0 0.0
    %998 = vmatpush1.msra.mxu0 0.0
    %999 = vmatprep.subr.mxu0 0.0
    %1000 = vmatpush1.msra.mxu0 0.0
    %1001 = vmatprep.subr.mxu0 0.0
    %1002 = vmatpush1.msra.mxu0 0.0
    %1003 = vmatprep.subr.mxu0 0.0
    %1004 = vmatpush1.msra.mxu0 0.0
    %1005 = vmatprep.subr.mxu0 0.0
    %1006 = vmatpush1.msra.mxu0 0.0
    %1007 = vmatprep.subr.mxu0 0.0
    %1008 = vmatpush1.msra.mxu0 0.0
    %1009 = vmatprep.subr.mxu0 0.0
    %1010 = vmatpush1.msra.mxu0 0.0
    %1011 = vmatprep.mubr.f32.mxu0 0.0
    %1012 = vmatmul.mubr.f32.gmra.mrb[0].mxu0 %v942
    %v1013 = vpop.f32.mrb[0].mxu0
    %v1014 = vadd.f32 0.0, %v1013
    %v1015 = vpop.f32.mrb[0].mxu0
    %1016 = vmatprep.mubr.f32.mxu0 0.0
    %1017 = vmatmul.mubr.f32.gmra.mrb[0].mxu0 %v945
    %v1018 = vpop.f32.mrb[0].mxu0
    %v1019 = vadd.f32 0.0, %v1018
    %v1020 = vpop.f32.mrb[0].mxu0
    %1021 = vdwg.mxu0
    %1024 = vrot.lane.b32.xlu0 %v614, 8
    %v1025 = vpop.permute.xlu0 %1024
    %1026 = vrot.lane.b32.xlu0 %v619, 8
    %v1027 = vpop.permute.xlu0 %1026
    %1032 = vrot.lane.b32.xlu0 %v814, 16
    %v1033 = vpop.permute.xlu0 %1032
    %1034 = vrot.lane.b32.xlu0 %v819, 16
    %v1035 = vpop.permute.xlu0 %1034
    %1040 = vrot.lane.b32.xlu0 %v1014, 24
    %v1041 = vpop.permute.xlu0 %1040
    %1042 = vrot.lane.b32.xlu0 %v1019, 24
    %v1043 = vpop.permute.xlu0 %1042
    %v1046 = vsel %vm228, %v414, %v1025
    %v1047 = vsel %vm228, %v419, %v1027
    %v1048 = vsel %vm312, %v1046, %v1033
    %v1049 = vsel %vm312, %v1047, %v1035
    %vm1050 = vcmask 195584
    %v1051 = vsel %vm1050, %v1048, %v1041
    %v1052 = vsel %vm1050, %v1049, %v1043
    %1057 = vrot.lane.b32.xlu0 %v63, 32
    %v1058 = vpop.permute.xlu0 %1057
    %1059 = vrot.lane.b32.xlu0 %v64, 32
    %v1060 = vpop.permute.xlu0 %1059
    %1061 = vrot.lane.b32.xlu0 %v65, 32
    %v1062 = vpop.permute.xlu0 %1061
    %1063 = vrot.lane.b32.xlu0 %v66, 32
    %v1064 = vpop.permute.xlu0 %1063
    %v1070 = vsel %vm83, %v1051, 0
    %v1073 = vsel %vm83, %v1052, 0
    %1075 = vmatprep.subr.mxu0 0.0
    %1076 = vmatpush1.msra.mxu0 %v1058
    %1077 = vmatprep.subr.mxu0 0.0
    %1078 = vmatpush1.msra.mxu0 %v1060
    %1079 = vmatprep.subr.mxu0 0.0
    %1080 = vmatpush1.msra.mxu0 %v1062
    %1081 = vmatprep.subr.mxu0 0.0
    %1082 = vmatpush1.msra.mxu0 %v1064
    %1083 = vmatprep.subr.mxu0 0.0
    %1084 = vmatpush1.msra.mxu0 0.0
    %1085 = vmatprep.subr.mxu0 0.0
    %1086 = vmatpush1.msra.mxu0 0.0
    %1087 = vmatprep.subr.mxu0 0.0
    %1088 = vmatpush1.msra.mxu0 0.0
    %1089 = vmatprep.subr.mxu0 0.0
    %1090 = vmatpush1.msra.mxu0 0.0
    %1091 = vmatprep.subr.mxu0 0.0
    %1092 = vmatpush1.msra.mxu0 0.0
    %1093 = vmatprep.subr.mxu0 0.0
    %1094 = vmatpush1.msra.mxu0 0.0
    %1095 = vmatprep.subr.mxu0 0.0
    %1096 = vmatpush1.msra.mxu0 0.0
    %1097 = vmatprep.subr.mxu0 0.0
    %1098 = vmatpush1.msra.mxu0 0.0
    %1099 = vmatprep.subr.mxu0 0.0
    %1100 = vmatpush1.msra.mxu0 0.0
    %1101 = vmatprep.subr.mxu0 0.0
    %1102 = vmatpush1.msra.mxu0 0.0
    %1103 = vmatprep.subr.mxu0 0.0
    %1104 = vmatpush1.msra.mxu0 0.0
    %1105 = vmatprep.subr.mxu0 0.0
    %1106 = vmatpush1.msra.mxu0 0.0
    %1107 = vmatprep.subr.mxu0 0.0
    %1108 = vmatpush1.msra.mxu0 0.0
    %1109 = vmatprep.subr.mxu0 0.0
    %1110 = vmatpush1.msra.mxu0 0.0
    %1111 = vmatprep.subr.mxu0 0.0
    %1112 = vmatpush1.msra.mxu0 0.0
    %1113 = vmatprep.subr.mxu0 0.0
    %1114 = vmatpush1.msra.mxu0 0.0
    %1115 = vmatprep.subr.mxu0 0.0
    %1116 = vmatpush1.msra.mxu0 0.0
    %1117 = vmatprep.subr.mxu0 0.0
    %1118 = vmatpush1.msra.mxu0 0.0
    %1119 = vmatprep.subr.mxu0 0.0
    %1120 = vmatpush1.msra.mxu0 0.0
    %1121 = vmatprep.subr.mxu0 0.0
    %1122 = vmatpush1.msra.mxu0 0.0
    %1123 = vmatprep.subr.mxu0 0.0
    %1124 = vmatpush1.msra.mxu0 0.0
    %1125 = vmatprep.subr.mxu0 0.0
    %1126 = vmatpush1.msra.mxu0 0.0
    %1127 = vmatprep.subr.mxu0 0.0
    %1128 = vmatpush1.msra.mxu0 0.0
    %1129 = vmatprep.subr.mxu0 0.0
    %1130 = vmatpush1.msra.mxu0 0.0
    %1131 = vmatprep.subr.mxu0 0.0
    %1132 = vmatpush1.msra.mxu0 0.0
    %1133 = vmatprep.subr.mxu0 0.0
    %1134 = vmatpush1.msra.mxu0 0.0
    %1135 = vmatprep.subr.mxu0 0.0
    %1136 = vmatpush1.msra.mxu0 0.0
    %1137 = vmatprep.subr.mxu0 0.0
    %1138 = vmatpush1.msra.mxu0 0.0
    %1139 = vmatprep.mubr.f32.mxu0 0.0
    %1140 = vmatmul.mubr.f32.gmra.mrb[0].mxu0 %v1070
    %v1141 = vpop.f32.mrb[0].mxu0
    %v1142 = vadd.f32 0.0, %v1141
    %v1143 = vpop.f32.mrb[0].mxu0
    %1144 = vmatprep.mubr.f32.mxu0 0.0
    %1145 = vmatmul.mubr.f32.gmra.mrb[0].mxu0 %v1073
    %v1146 = vpop.f32.mrb[0].mxu0
    %v1147 = vadd.f32 0.0, %v1146
    %v1148 = vpop.f32.mrb[0].mxu0
    %1149 = vdwg.mxu0
    %v1150 = vadd.f32 %v59, %v1142
    %v1151 = vadd.f32 %v60, %v1147
    %v1152 = vlaneseq
    %v1153 = vshrl.u32 %v1152, 7
    %v1154 = vsub.s32 0, %v1153
    %v1155 = vrot.slane %v76, %v1154
    %v1156 = vadd.f32 %v1150, %v1155
    %v1157 = vadd.f32 %v1151, %v1155
    %v1158 = vsel %vm83, %v1156, 0.0
    %1159 = vadd.xlane.f32.xlu0 %v1158
    %v1160 = vpop.xlane.xlu0 %1159
    %v1161 = vsel %vm83, %v1157, 0.0
    %1162 = vadd.xlane.f32.xlu0 %v1161
    %v1163 = vpop.xlane.xlu0 %1162
    %v1164 = vmul.f32 %v1160, %v90
    %v1165 = vmul.f32 %v1163, %v90
    %v1166 = vsub.f32 %v1156, %v1164
    %v1167 = vsub.f32 %v1157, %v1165
    %v1168 = vmul.f32 %v1166, %v1166
    %v1169 = vmul.f32 %v1167, %v1167
    %v1170 = vsel %vm83, %v1168, 0.0
    %1171 = vadd.xlane.f32.xlu0 %v1170
    %v1172 = vpop.xlane.xlu0 %1171
    %v1173 = vsel %vm83, %v1169, 0.0
    %1174 = vadd.xlane.f32.xlu0 %v1173
    %v1175 = vpop.xlane.xlu0 %1174
    %v1176 = vmul.f32 %v1172, 0.032258064
    %v1177 = vmul.f32 %v1175, 0.032258064
    %v1178 = vrsqrt.pop %v1176
    %v1179 = vmul.f32 %v1176, %v1178
    %vm1180 = vcmp.eq.f32.partialorder %v1176, inf
    %v1181 = vsel %vm1180, %v1176, %v1179
    %vm1182 = vcmp.eq.f32.partialorder %v1176, 0.0
    %v1183 = vand.u32 %v1176, 2147483648
    %v1184 = vsel %vm1182, %v1183, %v1181
    %v1185 = vrsqrt.pop %v1177
    %v1186 = vmul.f32 %v1177, %v1185
    %vm1187 = vcmp.eq.f32.partialorder %v1177, inf
    %v1188 = vsel %vm1187, %v1177, %v1186
    %vm1189 = vcmp.eq.f32.partialorder %v1177, 0.0
    %v1190 = vand.u32 %v1177, 2147483648
    %v1191 = vsel %vm1189, %v1190, %v1188
    %v1192 = vadd.f32 %v1184, 1e-06
    %v1193 = vadd.f32 %v1191, 1e-06
    %v1194 = vrcp.pop %v1192
    %v1195 = vrcp.pop %v1193
    %v1196 = vlaneseq
    %v1197 = vshrl.u32 %v1196, 7
    %v1198 = vsub.s32 0, %v1197
    %v1199 = vrot.slane %v80, %v1198
    %v1200 = vmul.f32 %v1199, %v1166
    %v1201 = vmul.f32 %v1199, %v1167
    %v1202 = vmul.f32 %v1200, %v1194
    %v1203 = vmul.f32 %v1201, %v1195
    %v1204 = vlaneseq
    %v1205 = vshrl.u32 %v1204, 7
    %v1206 = vsub.s32 0, %v1205
    %v1207 = vrot.slane %v82, %v1206
    %v1208 = vadd.f32 %v1202, %v1207
    %v1209 = vadd.f32 %v1203, %v1207
    %v1210 = vlaneseq
    %v1211 = vshrl.u32 %v1210, 7
    %v1212 = vsub.s32 0, %v1211
    %v1213 = vrot.slane %v77, %v1212
    %v1215 = vsel %vm83, %v1208, 0
    %v1218 = vsel %vm83, %v1209, 0
    %1220 = vmatprep.subr.mxu0 0.0
    %1221 = vmatpush1.msra.mxu0 %v67
    %1222 = vmatprep.subr.mxu0 0.0
    %1223 = vmatpush1.msra.mxu0 %v68
    %1224 = vmatprep.subr.mxu0 0.0
    %1225 = vmatpush1.msra.mxu0 %v69
    %1226 = vmatprep.subr.mxu0 0.0
    %1227 = vmatpush1.msra.mxu0 %v70
    %1228 = vmatprep.subr.mxu0 0.0
    %1229 = vmatpush1.msra.mxu0 0.0
    %1230 = vmatprep.subr.mxu0 0.0
    %1231 = vmatpush1.msra.mxu0 0.0
    %1232 = vmatprep.subr.mxu0 0.0
    %1233 = vmatpush1.msra.mxu0 0.0
    %1234 = vmatprep.subr.mxu0 0.0
    %1235 = vmatpush1.msra.mxu0 0.0
    %1236 = vmatprep.subr.mxu0 0.0
    %1237 = vmatpush1.msra.mxu0 0.0
    %1238 = vmatprep.subr.mxu0 0.0
    %1239 = vmatpush1.msra.mxu0 0.0
    %1240 = vmatprep.subr.mxu0 0.0
    %1241 = vmatpush1.msra.mxu0 0.0
    %1242 = vmatprep.subr.mxu0 0.0
    %1243 = vmatpush1.msra.mxu0 0.0
    %1244 = vmatprep.subr.mxu0 0.0
    %1245 = vmatpush1.msra.mxu0 0.0
    %1246 = vmatprep.subr.mxu0 0.0
    %1247 = vmatpush1.msra.mxu0 0.0
    %1248 = vmatprep.subr.mxu0 0.0
    %1249 = vmatpush1.msra.mxu0 0.0
    %1250 = vmatprep.subr.mxu0 0.0
    %1251 = vmatpush1.msra.mxu0 0.0
    %1252 = vmatprep.subr.mxu0 0.0
    %1253 = vmatpush1.msra.mxu0 0.0
    %1254 = vmatprep.subr.mxu0 0.0
    %1255 = vmatpush1.msra.mxu0 0.0
    %1256 = vmatprep.subr.mxu0 0.0
    %1257 = vmatpush1.msra.mxu0 0.0
    %1258 = vmatprep.subr.mxu0 0.0
    %1259 = vmatpush1.msra.mxu0 0.0
    %1260 = vmatprep.subr.mxu0 0.0
    %1261 = vmatpush1.msra.mxu0 0.0
    %1262 = vmatprep.subr.mxu0 0.0
    %1263 = vmatpush1.msra.mxu0 0.0
    %1264 = vmatprep.subr.mxu0 0.0
    %1265 = vmatpush1.msra.mxu0 0.0
    %1266 = vmatprep.subr.mxu0 0.0
    %1267 = vmatpush1.msra.mxu0 0.0
    %1268 = vmatprep.subr.mxu0 0.0
    %1269 = vmatpush1.msra.mxu0 0.0
    %1270 = vmatprep.subr.mxu0 0.0
    %1271 = vmatpush1.msra.mxu0 0.0
    %1272 = vmatprep.subr.mxu0 0.0
    %1273 = vmatpush1.msra.mxu0 0.0
    %1274 = vmatprep.subr.mxu0 0.0
    %1275 = vmatpush1.msra.mxu0 0.0
    %1276 = vmatprep.subr.mxu0 0.0
    %1277 = vmatpush1.msra.mxu0 0.0
    %1278 = vmatprep.subr.mxu0 0.0
    %1279 = vmatpush1.msra.mxu0 0.0
    %1280 = vmatprep.subr.mxu0 0.0
    %1281 = vmatpush1.msra.mxu0 0.0
    %1282 = vmatprep.subr.mxu0 0.0
    %1283 = vmatpush1.msra.mxu0 0.0
    %1284 = vmatprep.mubr.f32.mxu0 0.0
    %1285 = vmatmul.mubr.f32.gmra.mrb[0].mxu0 %v1215
    %v1286 = vpop.f32.mrb[0].mxu0
    %v1287 = vadd.f32 %v1213, %v1286
    %v1288 = vpop.f32.mrb[0].mxu0
    %1289 = vmatprep.mubr.f32.mxu0 0.0
    %1290 = vmatmul.mubr.f32.gmra.mrb[0].mxu0 %v1218
    %v1291 = vpop.f32.mrb[0].mxu0
    %v1292 = vadd.f32 %v1213, %v1291
    %v1293 = vpop.f32.mrb[0].mxu0
    %1294 = vdwg.mxu0
    %v1295 = vmax.f32 %v1287, 0.0
    %v1296 = vmax.f32 %v1292, 0.0
    %1305 = vrot.lane.b32.xlu0 %v67, 64
    %v1306 = vpop.permute.xlu0 %1305
    %1307 = vrot.lane.b32.xlu0 %v68, 64
    %v1308 = vpop.permute.xlu0 %1307
    %1309 = vrot.lane.b32.xlu0 %v69, 64
    %v1310 = vpop.permute.xlu0 %1309
    %1311 = vrot.lane.b32.xlu0 %v70, 64
    %v1312 = vpop.permute.xlu0 %1311
    %1313 = vrot.lane.b32.xlu0 %v71, 64
    %v1314 = vpop.permute.xlu0 %1313
    %1315 = vrot.lane.b32.xlu0 %v72, 64
    %v1316 = vpop.permute.xlu0 %1315
    %1317 = vrot.lane.b32.xlu0 %v73, 64
    %v1318 = vpop.permute.xlu0 %1317
    %1319 = vrot.lane.b32.xlu0 %v74, 64
    %v1320 = vpop.permute.xlu0 %1319
    %vm1329 = vcmask 523264
    %v1331 = vsel %vm1329, %v1295, 0
    %v1334 = vsel %vm1329, %v1296, 0
    %1336 = vmatprep.subr.mxu0 0.0
    %1337 = vmatpush1.msra.mxu0 %v1306
    %1338 = vmatprep.subr.mxu0 0.0
    %1339 = vmatpush1.msra.mxu0 %v1308
    %1340 = vmatprep.subr.mxu0 0.0
    %1341 = vmatpush1.msra.mxu0 %v1310
    %1342 = vmatprep.subr.mxu0 0.0
    %1343 = vmatpush1.msra.mxu0 %v1312
    %1344 = vmatprep.subr.mxu0 0.0
    %1345 = vmatpush1.msra.mxu0 %v1314
    %1346 = vmatprep.subr.mxu0 0.0
    %1347 = vmatpush1.msra.mxu0 %v1316
    %1348 = vmatprep.subr.mxu0 0.0
    %1349 = vmatpush1.msra.mxu0 %v1318
    %1350 = vmatprep.subr.mxu0 0.0
    %1351 = vmatpush1.msra.mxu0 %v1320
    %1352 = vmatprep.subr.mxu0 0.0
    %1353 = vmatpush1.msra.mxu0 0.0
    %1354 = vmatprep.subr.mxu0 0.0
    %1355 = vmatpush1.msra.mxu0 0.0
    %1356 = vmatprep.subr.mxu0 0.0
    %1357 = vmatpush1.msra.mxu0 0.0
    %1358 = vmatprep.subr.mxu0 0.0
    %1359 = vmatpush1.msra.mxu0 0.0
    %1360 = vmatprep.subr.mxu0 0.0
    %1361 = vmatpush1.msra.mxu0 0.0
    %1362 = vmatprep.subr.mxu0 0.0
    %1363 = vmatpush1.msra.mxu0 0.0
    %1364 = vmatprep.subr.mxu0 0.0
    %1365 = vmatpush1.msra.mxu0 0.0
    %1366 = vmatprep.subr.mxu0 0.0
    %1367 = vmatpush1.msra.mxu0 0.0
    %1368 = vmatprep.subr.mxu0 0.0
    %1369 = vmatpush1.msra.mxu0 0.0
    %1370 = vmatprep.subr.mxu0 0.0
    %1371 = vmatpush1.msra.mxu0 0.0
    %1372 = vmatprep.subr.mxu0 0.0
    %1373 = vmatpush1.msra.mxu0 0.0
    %1374 = vmatprep.subr.mxu0 0.0
    %1375 = vmatpush1.msra.mxu0 0.0
    %1376 = vmatprep.subr.mxu0 0.0
    %1377 = vmatpush1.msra.mxu0 0.0
    %1378 = vmatprep.subr.mxu0 0.0
    %1379 = vmatpush1.msra.mxu0 0.0
    %1380 = vmatprep.subr.mxu0 0.0
    %1381 = vmatpush1.msra.mxu0 0.0
    %1382 = vmatprep.subr.mxu0 0.0
    %1383 = vmatpush1.msra.mxu0 0.0
    %1384 = vmatprep.subr.mxu0 0.0
    %1385 = vmatpush1.msra.mxu0 0.0
    %1386 = vmatprep.subr.mxu0 0.0
    %1387 = vmatpush1.msra.mxu0 0.0
    %1388 = vmatprep.subr.mxu0 0.0
    %1389 = vmatpush1.msra.mxu0 0.0
    %1390 = vmatprep.subr.mxu0 0.0
    %1391 = vmatpush1.msra.mxu0 0.0
    %1392 = vmatprep.subr.mxu0 0.0
    %1393 = vmatpush1.msra.mxu0 0.0
    %1394 = vmatprep.subr.mxu0 0.0
    %1395 = vmatpush1.msra.mxu0 0.0
    %1396 = vmatprep.subr.mxu0 0.0
    %1397 = vmatpush1.msra.mxu0 0.0
    %1398 = vmatprep.subr.mxu0 0.0
    %1399 = vmatpush1.msra.mxu0 0.0
    %1400 = vmatprep.mubr.f32.mxu0 0.0
    %1401 = vmatmul.mubr.f32.gmra.mrb[0].mxu0 %v1331
    %v1402 = vpop.f32.mrb[0].mxu0
    %v1403 = vadd.f32 0.0, %v1402
    %v1404 = vpop.f32.mrb[0].mxu0
    %1405 = vmatprep.mubr.f32.mxu0 0.0
    %1406 = vmatmul.mubr.f32.gmra.mrb[0].mxu0 %v1334
    %v1407 = vpop.f32.mrb[0].mxu0
    %v1408 = vadd.f32 0.0, %v1407
    %v1409 = vpop.f32.mrb[0].mxu0
    %1410 = vdwg.mxu0
    %v1411 = vadd.f32 %v1156, %v1403
    %v1412 = vadd.f32 %v1157, %v1408
    %v1413 = vlaneseq
    %v1414 = vshrl.u32 %v1413, 7
    %v1415 = vsub.s32 0, %v1414
    %v1416 = vrot.slane %v78, %v1415
    %v1417 = vadd.f32 %v1411, %v1416
    %v1418 = vadd.f32 %v1412, %v1416
    %1419 = vst.msk [vmem:[#allocation8] sm:$0xff] %vm83, %v1417
    %1420 = vst.msk [vmem:[#allocation8 + $0x8] sm:$0xff] %vm83, %v1418
    // Predicated region
    $region30: #{tpu_custom_call.1} parent=1 // pred_check
      _
    $region31: #{tpu_custom_call.1} parent=1 // pred_check_branch
      %1422 = sbr.rel (0) target = $region33
    $region32: #{tpu_custom_call.1} parent=1 // pred_region
      %s1424 = ssub.s32 256, 256
      %1425 = vsyncadd [#allocation4], %s1424
      %s1426 = sshll.u32 [#allocation8], 4
      %s1427 = int_to_ptr.vmem [resolvable:$true] %s1426
      %1432 = dma.vmem_to_hbm [thread:$0]  %s1427, 256, %s4, [#allocation4], 128, 128, 8
    $region33: #{tpu_custom_call.1} parent=1 // pred_fallthru
      _
    // Predicated region
    $region34: #{tpu_custom_call.1} parent=1 // pred_check
      _
    $region35: #{tpu_custom_call.1} parent=1 // pred_check_branch
      %1434 = sbr.rel (0) target = $region37
    $region36: #{tpu_custom_call.1} parent=1 // pred_region
      %1435 = dma.done [#allocation4], 256
    $region37: #{tpu_custom_call.1} parent=1 // pred_fallthru
      _
    %1436 = vsyncpa [#allocation3], 1
    %1437 = vsyncpa [#allocation6], 1
    %1438 = vsyncpa [#allocation4], 1

</llo_original>
